<compile_context>
chip_gen: v7x
topology: tpu7x:2x2x1
jax: 0.10.0
libtpu: 0.0.40
codegen_flags: <defaults>
</compile_context>

<pallas_src>
import functools
import math

import jax
import jax.numpy as jnp
from jax.experimental import pallas as pl
from jax.experimental.pallas import tpu as pltpu  # noqa: F401 (TPU backend)

# ---- small synthetic BERT config (same topology as BertForPreTraining) ----
HIDDEN = 32
LAYERS = 2
HEADS = 4
HEAD_DIM = HIDDEN // HEADS
INTERMEDIATE = 4 * HIDDEN
VOCAB = 128
TYPE_VOCAB = 2
MAX_POS = 64
NCLASSES = 3
CLS_PAD = 128                      # lane-padded classifier width (first NCLASSES valid)
LN_EPS = 1e-12
ATTN_SCALE = 1.0 / math.sqrt(HEAD_DIM)


def _full_spec(shape):
    n = len(shape)
    return pl.BlockSpec(shape, lambda *_: (0,) * n)


# ----------------------- in-kernel math helpers -----------------------------
def _erf(x):
    # Abramowitz & Stegun 7.1.26 (|err| < 1.5e-7): exp (EUP) + VPU poly only.
    t = 1.0 / (1.0 + 0.3275911 * jnp.abs(x))
    poly = ((((1.061405429 * t - 1.453152027) * t + 1.421413741) * t
             - 0.284496736) * t + 0.254829592) * t
    y = 1.0 - poly * jnp.exp(-(x * x))
    return jnp.where(x >= 0.0, y, -y)


def _gelu_erf(x):
    # HF BERT "gelu" (erf form) — matches BertForPreTraining activation.
    return 0.5 * x * (1.0 + _erf(x * 0.7071067811865476))


def _layernorm(x, g, b):
    mu = jnp.mean(x, axis=-1, keepdims=True)
    xc = x - mu
    var = jnp.mean(xc * xc, axis=-1, keepdims=True)
    return xc * jax.lax.rsqrt(var + LN_EPS) * g + b


# --------------------------- Pallas kernels ---------------------------------
def _embed_ln_kernel(x_ref, g_ref, b_ref, o_ref):
    # embedding LayerNorm (no residual — dedicated path, no dummy zeros operand)
    o_ref[...] = _layernorm(x_ref[...], g_ref[...], b_ref[...])


def embed_layernorm(x, gamma, beta):
    M, H = x.shape
    return pl.pallas_call(
        _embed_ln_kernel,
        out_shape=jax.ShapeDtypeStruct((M, H), jnp.float32),
        in_specs=[_full_spec((M, H)), _full_spec((1, H)), _full_spec((1, H))],
        out_specs=_full_spec((M, H)),
    )(x, gamma.reshape(1, H), beta.reshape(1, H))


def _encoder_layer_kernel(x_ref, mask_ref, wqkv_ref, bqkv_ref,
                          wao_ref, bao_ref, g1_ref, b1_ref,
                          wfi_ref, bfi_ref, wfo_ref, bfo_ref,
                          g2_ref, b2_ref, o_ref, *, batch, seq):
    x = x_ref[...]                           # [B*S, H]
    mask = mask_ref[...]                     # [B, S] additive mask

    # ---- fused QKV projection: one MXU pass, lane width 3H ----
    qkv = jnp.dot(x, wqkv_ref[...],
                  preferred_element_type=jnp.float32) + bqkv_ref[...]

    # ---- masked multi-head self-attention, fully VMEM-resident ----
    # TODO(synk): at BERT-Large scale replace this unrolled loop with a
    # flash-attention layout (grid=(B*NH, S//tq, S//tk), online softmax).
    ctx_rows = []
    for b in range(batch):
        r0 = b * seq
        m_b = mask[b:b + 1, :]                                   # [1, S]
        heads = []
        for h in range(HEADS):
            c0 = h * HEAD_DIM
            q_h = qkv[r0:r0 + seq, c0:c0 + HEAD_DIM]
            k_h = qkv[r0:r0 + seq, HIDDEN + c0:HIDDEN + c0 + HEAD_DIM]
            v_h = qkv[r0:r0 + seq, 2 * HIDDEN + c0:2 * HIDDEN + c0 + HEAD_DIM]
            # contract last axes of q and k directly (no explicit k.T / XLU transpose)
            s = jax.lax.dot_general(
                q_h, k_h, (((1,), (1,)), ((), ())),
                preferred_element_type=jnp.float32) * ATTN_SCALE + m_b
            s = s - jnp.max(s, axis=-1, keepdims=True)
            p = jnp.exp(s)
            p = p * pl.reciprocal(jnp.sum(p, axis=-1, keepdims=True), approx=True)
            heads.append(jnp.dot(p, v_h, preferred_element_type=jnp.float32))
        ctx_rows.append(jnp.concatenate(heads, axis=-1))         # [S, H]
    ctx = jnp.concatenate(ctx_rows, axis=0)                      # [B*S, H]

    # ---- attention output projection + residual + LayerNorm (fused epilogue) ----
    attn = jnp.dot(ctx, wao_ref[...],
                   preferred_element_type=jnp.float32) + bao_ref[...]
    x = _layernorm(attn + x, g1_ref[...], b1_ref[...])

    # ---- FFN: the [M, 4H] erf-GELU intermediate never leaves VMEM ----
    hmid = jnp.dot(x, wfi_ref[...],
                   preferred_element_type=jnp.float32) + bfi_ref[...]
    hmid = _gelu_erf(hmid)
    ffn = jnp.dot(hmid, wfo_ref[...],
                  preferred_element_type=jnp.float32) + bfo_ref[...]
    o_ref[...] = _layernorm(ffn + x, g2_ref[...], b2_ref[...])


def encoder_layer(x, add_mask, lp, batch, seq):
    M, H = x.shape
    ins = [
        x, add_mask,
        lp["qkv_w"], lp["qkv_b"].reshape(1, 3 * H),
        lp["ao_w"], lp["ao_b"].reshape(1, H),
        lp["attn_ln_g"].reshape(1, H), lp["attn_ln_b"].reshape(1, H),
        lp["fi_w"], lp["fi_b"].reshape(1, INTERMEDIATE),
        lp["fo_w"], lp["fo_b"].reshape(1, H),
        lp["ffn_ln_g"].reshape(1, H), lp["ffn_ln_b"].reshape(1, H),
    ]
    return pl.pallas_call(
        functools.partial(_encoder_layer_kernel, batch=batch, seq=seq),
        out_shape=jax.ShapeDtypeStruct((M, H), jnp.float32),
        in_specs=[_full_spec(a.shape) for a in ins],
        out_specs=_full_spec((M, H)),
    )(*ins)


def _pooler_cls_kernel(cls_ref, pw_ref, pb_ref, cw_ref, cb_ref, o_ref):
    pooled = jnp.tanh(
        jnp.dot(cls_ref[...], pw_ref[...],
                preferred_element_type=jnp.float32) + pb_ref[...])
    o_ref[...] = jnp.dot(pooled, cw_ref[...],
                         preferred_element_type=jnp.float32) + cb_ref[...]


def pooler_classifier(cls_tok, pool_w, pool_b, cls_w, cls_b):
    B, H = cls_tok.shape
    # lane-pad classifier to a full 128-lane tile (unmasked stores); the first
    # NCLASSES columns hold the real logits.
    cw = jnp.zeros((H, CLS_PAD), jnp.float32).at[:, :NCLASSES].set(cls_w)
    cb = jnp.zeros((1, CLS_PAD), jnp.float32).at[0, :NCLASSES].set(cls_b)
    ins = [cls_tok, pool_w, pool_b.reshape(1, H), cw, cb]
    out = pl.pallas_call(
        _pooler_cls_kernel,
        out_shape=jax.ShapeDtypeStruct((B, CLS_PAD), jnp.float32),
        in_specs=[_full_spec(a.shape) for a in ins],
        out_specs=_full_spec((B, CLS_PAD)),
    )(*ins)
    return out[:, :NCLASSES]


# --------------------------- parameters -------------------------------------
def init_params(key):
    cnt = [0]

    def nrm(shape):
        cnt[0] += 1
        return 0.02 * jax.random.normal(
            jax.random.fold_in(key, cnt[0]), shape, dtype=jnp.float32)

    zeros = lambda s: jnp.zeros(s, jnp.float32)
    ones = lambda s: jnp.ones(s, jnp.float32)

    params = {
        "word_emb": nrm((VOCAB, HIDDEN)),
        "pos_emb": nrm((MAX_POS, HIDDEN)),
        "type_emb": nrm((TYPE_VOCAB, HIDDEN)),
        "emb_ln_g": ones((HIDDEN,)), "emb_ln_b": zeros((HIDDEN,)),
        "layers": [],
        # pooler
        "pool_w": nrm((HIDDEN, HIDDEN)), "pool_b": zeros((HIDDEN,)),
        # replaced head: nn.Linear(hidden, nclasses, bias=True)
        "cls_w": nrm((HIDDEN, NCLASSES)), "cls_b": zeros((NCLASSES,)),
    }
    for _ in range(LAYERS):
        params["layers"].append({
            # q/k/v projections stored fused as a single [H, 3H] weight
            "qkv_w": nrm((HIDDEN, 3 * HIDDEN)), "qkv_b": zeros((3 * HIDDEN,)),
            "ao_w": nrm((HIDDEN, HIDDEN)), "ao_b": zeros((HIDDEN,)),
            "attn_ln_g": ones((HIDDEN,)), "attn_ln_b": zeros((HIDDEN,)),
            "fi_w": nrm((HIDDEN, INTERMEDIATE)), "fi_b": zeros((INTERMEDIATE,)),
            "fo_w": nrm((INTERMEDIATE, HIDDEN)), "fo_b": zeros((HIDDEN,)),
            "ffn_ln_g": ones((HIDDEN,)), "ffn_ln_b": zeros((HIDDEN,)),
        })
    return params


# --------------------------- forward -----------------------------------------
def twitter_bert_forward(params, input_ids, attention_mask):
    B, S = input_ids.shape

    # --- embeddings (gather glue in plain JAX; LayerNorm in Pallas) ---
    # TODO(synk): token_type_ids hard-coded to 0 (single-segment inputs).
    emb = (params["word_emb"][input_ids]
           + params["pos_emb"][jnp.arange(S)][None, :, :]
           + params["type_emb"][0][None, None, :])
    x = emb.reshape(B * S, HIDDEN).astype(jnp.float32)
    x = embed_layernorm(x, params["emb_ln_g"], params["emb_ln_b"])

    # HF additive attention mask convention: (1 - mask) * -10000
    add_mask = (1.0 - attention_mask.astype(jnp.float32)) * -10000.0   # [B, S]

    # --- fused transformer encoder layers: ONE pallas_call per layer ---
    for lp in params["layers"]:
        x = encoder_layer(x, add_mask, lp, B, S)

    # --- pooler (tanh) + replaced seq_relationship classifier, fused ---
    cls_tok = x.reshape(B, S, HIDDEN)[:, 0, :]                          # [B, H]
    return pooler_classifier(cls_tok, params["pool_w"], params["pool_b"],
                             params["cls_w"], params["cls_b"])


# --------------------------- main ---------------------------------------------
if __name__ == "__main__":
    key = jax.random.PRNGKey(0)
    params = init_params(key)

    B, S = 2, 8
    input_ids = jax.random.randint(jax.random.fold_in(key, 999),
                                   (B, S), 0, VOCAB, dtype=jnp.int32)
    attention_mask = jnp.ones((B, S), dtype=jnp.int32)
    attention_mask = attention_mask.at[1, 6:].set(0)   # pad last 2 tokens of ex. 1

    fwd = jax.jit(twitter_bert_forward)
    logits = fwd(params, input_ids, attention_mask)
    jax.block_until_ready(logits)
    assert logits.shape == (B, NCLASSES)
    print("KERNEL_OK")
</pallas_src>

<mosaic_0001>
module attributes {stable_mosaic.version = 11 : i64} {
  func.func @_embed_ln_kernel(%arg0: memref<16x32xf32, #tpu.memory_space<vmem>>, %arg1: memref<1x32xf32, #tpu.memory_space<vmem>>, %arg2: memref<1x32xf32, #tpu.memory_space<vmem>>, %arg3: memref<16x32xf32, #tpu.memory_space<vmem>>) attributes {dimension_semantics = [], scalar_prefetch = 0 : i64, scratch_operands = 0 : i64, tpu.core_type = #tpu.core_type<tc>} {
    %c0 = arith.constant 0 : index
    %c0_0 = arith.constant 0 : index
    %0 = vector.load %arg0[%c0, %c0_0] : memref<16x32xf32, #tpu.memory_space<vmem>>, vector<16x32xf32>
    %c0_1 = arith.constant 0 : index
    %c0_2 = arith.constant 0 : index
    %1 = vector.load %arg1[%c0_1, %c0_2] : memref<1x32xf32, #tpu.memory_space<vmem>>, vector<1x32xf32>
    %c0_3 = arith.constant 0 : index
    %c0_4 = arith.constant 0 : index
    %2 = vector.load %arg2[%c0_3, %c0_4] : memref<1x32xf32, #tpu.memory_space<vmem>>, vector<1x32xf32>
    %cst = arith.constant dense<0.000000e+00> : vector<16xf32>
    %3 = vector.multi_reduction <add>, %0, %cst [1] : vector<16x32xf32> to vector<16xf32>
    %4 = vector.shape_cast %3 : vector<16xf32> to vector<16x1xf32>
    %cst_5 = arith.constant 3.200000e+01 : f32
    %5 = vector.broadcast %cst_5 : f32 to vector<16x1xf32>
    %6 = arith.divf %4, %5 : vector<16x1xf32>
    %7 = vector.broadcast %6 : vector<16x1xf32> to vector<16x32xf32>
    %8 = arith.subf %0, %7 : vector<16x32xf32>
    %9 = arith.mulf %8, %8 : vector<16x32xf32>
    %cst_6 = arith.constant dense<0.000000e+00> : vector<16xf32>
    %10 = vector.multi_reduction <add>, %9, %cst_6 [1] : vector<16x32xf32> to vector<16xf32>
    %11 = vector.shape_cast %10 : vector<16xf32> to vector<16x1xf32>
    %cst_7 = arith.constant 3.200000e+01 : f32
    %12 = vector.broadcast %cst_7 : f32 to vector<16x1xf32>
    %13 = arith.divf %11, %12 : vector<16x1xf32>
    %cst_8 = arith.constant 9.99999996E-13 : f32
    %14 = vector.broadcast %cst_8 : f32 to vector<16x1xf32>
    %15 = arith.addf %13, %14 : vector<16x1xf32>
    %16 = math.rsqrt %15 : vector<16x1xf32>
    %17 = vector.broadcast %16 : vector<16x1xf32> to vector<16x32xf32>
    %18 = arith.mulf %8, %17 : vector<16x32xf32>
    %19 = vector.broadcast %1 : vector<1x32xf32> to vector<16x32xf32>
    %20 = arith.mulf %18, %19 : vector<16x32xf32>
    %21 = vector.broadcast %2 : vector<1x32xf32> to vector<16x32xf32>
    %22 = arith.addf %20, %21 : vector<16x32xf32>
    %c0_9 = arith.constant 0 : index
    %c0_10 = arith.constant 0 : index
    %23 = vector.load %arg3[%c0_9, %c0_10] : memref<16x32xf32, #tpu.memory_space<vmem>>, vector<16x32xf32>
    tpu.vector_store %arg3[%c0_9, %c0_10], %22 {strides = array<i32>} : memref<16x32xf32, #tpu.memory_space<vmem>>, vector<16x32xf32>,
    return
  }
}

module attributes {stable_mosaic.version = 11 : i64} {
  func.func @_encoder_layer_kernel(%arg0: memref<16x32xf32, #tpu.memory_space<vmem>>, %arg1: memref<2x8xf32, #tpu.memory_space<vmem>>, %arg2: memref<32x96xf32, #tpu.memory_space<vmem>>, %arg3: memref<1x96xf32, #tpu.memory_space<vmem>>, %arg4: memref<32x32xf32, #tpu.memory_space<vmem>>, %arg5: memref<1x32xf32, #tpu.memory_space<vmem>>, %arg6: memref<1x32xf32, #tpu.memory_space<vmem>>, %arg7: memref<1x32xf32, #tpu.memory_space<vmem>>, %arg8: memref<32x128xf32, #tpu.memory_space<vmem>>, %arg9: memref<1x128xf32, #tpu.memory_space<vmem>>, %arg10: memref<128x32xf32, #tpu.memory_space<vmem>>, %arg11: memref<1x32xf32, #tpu.memory_space<vmem>>, %arg12: memref<1x32xf32, #tpu.memory_space<vmem>>, %arg13: memref<1x32xf32, #tpu.memory_space<vmem>>, %arg14: memref<16x32xf32, #tpu.memory_space<vmem>>) attributes {dimension_semantics = [], scalar_prefetch = 0 : i64, scratch_operands = 0 : i64, tpu.core_type = #tpu.core_type<tc>} {
    %c0 = arith.constant 0 : index
    %c0_0 = arith.constant 0 : index
    %0 = vector.load %arg0[%c0, %c0_0] : memref<16x32xf32, #tpu.memory_space<vmem>>, vector<16x32xf32>
    %c0_1 = arith.constant 0 : index
    %c0_2 = arith.constant 0 : index
    %1 = vector.load %arg1[%c0_1, %c0_2] : memref<2x8xf32, #tpu.memory_space<vmem>>, vector<2x8xf32>
    %c0_3 = arith.constant 0 : index
    %c0_4 = arith.constant 0 : index
    %2 = vector.load %arg2[%c0_3, %c0_4] : memref<32x96xf32, #tpu.memory_space<vmem>>, vector<32x96xf32>
    %cst = arith.constant dense<0.000000e+00> : vector<16x96xf32>
    %3 = tpu.matmul %0, %2, %cst {dimension_numbers = #tpu.dot_dimension_numbers<[1], [0], [0], [1], [0, 0, 1, 1], [], []>} : vector<16x32xf32>, vector<32x96xf32>, vector<16x96xf32> -> vector<16x96xf32>
    %c0_5 = arith.constant 0 : index
    %c0_6 = arith.constant 0 : index
    %4 = vector.load %arg3[%c0_5, %c0_6] : memref<1x96xf32, #tpu.memory_space<vmem>>, vector<1x96xf32>
    %5 = vector.broadcast %4 : vector<1x96xf32> to vector<16x96xf32>
    %6 = arith.addf %3, %5 : vector<16x96xf32>
    %7 = vector.extract_strided_slice %1 {offsets = [0, 0], sizes = [1, 8], strides = [1, 1]} : vector<2x8xf32> to vector<1x8xf32>
    %8 = vector.extract_strided_slice %6 {offsets = [0, 0], sizes = [8, 8], strides = [1, 1]} : vector<16x96xf32> to vector<8x8xf32>
    %9 = vector.extract_strided_slice %6 {offsets = [0, 32], sizes = [8, 8], strides = [1, 1]} : vector<16x96xf32> to vector<8x8xf32>
    %10 = vector.extract_strided_slice %6 {offsets = [0, 64], sizes = [8, 8], strides = [1, 1]} : vector<16x96xf32> to vector<8x8xf32>
    %cst_7 = arith.constant dense<0.000000e+00> : vector<8x8xf32>
    %11 = tpu.matmul %8, %9, %cst_7 {dimension_numbers = #tpu.dot_dimension_numbers<[1], [1], [0], [0], [0, 0, 1, 0], [], []>} : vector<8x8xf32>, vector<8x8xf32>, vector<8x8xf32> -> vector<8x8xf32>
    %cst_8 = arith.constant 0.353553385 : f32
    %12 = vector.broadcast %cst_8 : f32 to vector<8x8xf32>
    %13 = arith.mulf %11, %12 : vector<8x8xf32>
    %14 = vector.broadcast %7 : vector<1x8xf32> to vector<8x8xf32>
    %15 = arith.addf %13, %14 : vector<8x8xf32>
    %cst_9 = arith.constant dense<0xFF800000> : vector<8xf32>
    %16 = vector.multi_reduction <maximumf>, %15, %cst_9 [1] : vector<8x8xf32> to vector<8xf32>
    %17 = vector.shape_cast %16 : vector<8xf32> to vector<8x1xf32>
    %18 = vector.broadcast %17 : vector<8x1xf32> to vector<8x8xf32>
    %19 = arith.subf %15, %18 : vector<8x8xf32>
    %20 = math.exp %19 : vector<8x8xf32>
    %cst_10 = arith.constant dense<0.000000e+00> : vector<8xf32>
    %21 = vector.multi_reduction <add>, %20, %cst_10 [1] : vector<8x8xf32> to vector<8xf32>
    %22 = vector.shape_cast %21 : vector<8xf32> to vector<8x1xf32>
    %23 = tpu.reciprocal %22 {approx = true} : vector<8x1xf32> -> vector<8x1xf32>
    %24 = vector.broadcast %23 : vector<8x1xf32> to vector<8x8xf32>
    %25 = arith.mulf %20, %24 : vector<8x8xf32>
    %cst_11 = arith.constant dense<0.000000e+00> : vector<8x8xf32>
    %26 = tpu.matmul %25, %10, %cst_11 {dimension_numbers = #tpu.dot_dimension_numbers<[1], [0], [0], [1], [0, 0, 1, 1], [], []>} : vector<8x8xf32>, vector<8x8xf32>, vector<8x8xf32> -> vector<8x8xf32>
    %27 = vector.extract_strided_slice %6 {offsets = [0, 8], sizes = [8, 8], strides = [1, 1]} : vector<16x96xf32> to vector<8x8xf32>
    %28 = vector.extract_strided_slice %6 {offsets = [0, 40], sizes = [8, 8], strides = [1, 1]} : vector<16x96xf32> to vector<8x8xf32>
    %29 = vector.extract_strided_slice %6 {offsets = [0, 72], sizes = [8, 8], strides = [1, 1]} : vector<16x96xf32> to vector<8x8xf32>
    %cst_12 = arith.constant dense<0.000000e+00> : vector<8x8xf32>
    %30 = tpu.matmul %27, %28, %cst_12 {dimension_numbers = #tpu.dot_dimension_numbers<[1], [1], [0], [0], [0, 0, 1, 0], [], []>} : vector<8x8xf32>, vector<8x8xf32>, vector<8x8xf32> -> vector<8x8xf32>
    %cst_13 = arith.constant 0.353553385 : f32
    %31 = vector.broadcast %cst_13 : f32 to vector<8x8xf32>
    %32 = arith.mulf %30, %31 : vector<8x8xf32>
    %33 = vector.broadcast %7 : vector<1x8xf32> to vector<8x8xf32>
    %34 = arith.addf %32, %33 : vector<8x8xf32>
    %cst_14 = arith.constant dense<0xFF800000> : vector<8xf32>
    %35 = vector.multi_reduction <maximumf>, %34, %cst_14 [1] : vector<8x8xf32> to vector<8xf32>
    %36 = vector.shape_cast %35 : vector<8xf32> to vector<8x1xf32>
    %37 = vector.broadcast %36 : vector<8x1xf32> to vector<8x8xf32>
    %38 = arith.subf %34, %37 : vector<8x8xf32>
    %39 = math.exp %38 : vector<8x8xf32>
    %cst_15 = arith.constant dense<0.000000e+00> : vector<8xf32>
    %40 = vector.multi_reduction <add>, %39, %cst_15 [1] : vector<8x8xf32> to vector<8xf32>
    %41 = vector.shape_cast %40 : vector<8xf32> to vector<8x1xf32>
    %42 = tpu.reciprocal %41 {approx = true} : vector<8x1xf32> -> vector<8x1xf32>
    %43 = vector.broadcast %42 : vector<8x1xf32> to vector<8x8xf32>
    %44 = arith.mulf %39, %43 : vector<8x8xf32>
    %cst_16 = arith.constant dense<0.000000e+00> : vector<8x8xf32>
    %45 = tpu.matmul %44, %29, %cst_16 {dimension_numbers = #tpu.dot_dimension_numbers<[1], [0], [0], [1], [0, 0, 1, 1], [], []>} : vector<8x8xf32>, vector<8x8xf32>, vector<8x8xf32> -> vector<8x8xf32>
    %46 = vector.extract_strided_slice %6 {offsets = [0, 16], sizes = [8, 8], strides = [1, 1]} : vector<16x96xf32> to vector<8x8xf32>
    %47 = vector.extract_strided_slice %6 {offsets = [0, 48], sizes = [8, 8], strides = [1, 1]} : vector<16x96xf32> to vector<8x8xf32>
    %48 = vector.extract_strided_slice %6 {offsets = [0, 80], sizes = [8, 8], strides = [1, 1]} : vector<16x96xf32> to vector<8x8xf32>
    %cst_17 = arith.constant dense<0.000000e+00> : vector<8x8xf32>
    %49 = tpu.matmul %46, %47, %cst_17 {dimension_numbers = #tpu.dot_dimension_numbers<[1], [1], [0], [0], [0, 0, 1, 0], [], []>} : vector<8x8xf32>, vector<8x8xf32>, vector<8x8xf32> -> vector<8x8xf32>
    %cst_18 = arith.constant 0.353553385 : f32
    %50 = vector.broadcast %cst_18 : f32 to vector<8x8xf32>
    %51 = arith.mulf %49, %50 : vector<8x8xf32>
    %52 = vector.broadcast %7 : vector<1x8xf32> to vector<8x8xf32>
    %53 = arith.addf %51, %52 : vector<8x8xf32>
    %cst_19 = arith.constant dense<0xFF800000> : vector<8xf32>
    %54 = vector.multi_reduction <maximumf>, %53, %cst_19 [1] : vector<8x8xf32> to vector<8xf32>
    %55 = vector.shape_cast %54 : vector<8xf32> to vector<8x1xf32>
    %56 = vector.broadcast %55 : vector<8x1xf32> to vector<8x8xf32>
    %57 = arith.subf %53, %56 : vector<8x8xf32>
    %58 = math.exp %57 : vector<8x8xf32>
    %cst_20 = arith.constant dense<0.000000e+00> : vector<8xf32>
    %59 = vector.multi_reduction <add>, %58, %cst_20 [1] : vector<8x8xf32> to vector<8xf32>
    %60 = vector.shape_cast %59 : vector<8xf32> to vector<8x1xf32>
    %61 = tpu.reciprocal %60 {approx = true} : vector<8x1xf32> -> vector<8x1xf32>
    %62 = vector.broadcast %61 : vector<8x1xf32> to vector<8x8xf32>
    %63 = arith.mulf %58, %62 : vector<8x8xf32>
    %cst_21 = arith.constant dense<0.000000e+00> : vector<8x8xf32>
    %64 = tpu.matmul %63, %48, %cst_21 {dimension_numbers = #tpu.dot_dimension_numbers<[1], [0], [0], [1], [0, 0, 1, 1], [], []>} : vector<8x8xf32>, vector<8x8xf32>, vector<8x8xf32> -> vector<8x8xf32>
    %65 = vector.extract_strided_slice %6 {offsets = [0, 24], sizes = [8, 8], strides = [1, 1]} : vector<16x96xf32> to vector<8x8xf32>
    %66 = vector.extract_strided_slice %6 {offsets = [0, 56], sizes = [8, 8], strides = [1, 1]} : vector<16x96xf32> to vector<8x8xf32>
    %67 = vector.extract_strided_slice %6 {offsets = [0, 88], sizes = [8, 8], strides = [1, 1]} : vector<16x96xf32> to vector<8x8xf32>
    %cst_22 = arith.constant dense<0.000000e+00> : vector<8x8xf32>
    %68 = tpu.matmul %65, %66, %cst_22 {dimension_numbers = #tpu.dot_dimension_numbers<[1], [1], [0], [0], [0, 0, 1, 0], [], []>} : vector<8x8xf32>, vector<8x8xf32>, vector<8x8xf32> -> vector<8x8xf32>
    %cst_23 = arith.constant 0.353553385 : f32
    %69 = vector.broadcast %cst_23 : f32 to vector<8x8xf32>
    %70 = arith.mulf %68, %69 : vector<8x8xf32>
    %71 = vector.broadcast %7 : vector<1x8xf32> to vector<8x8xf32>
    %72 = arith.addf %70, %71 : vector<8x8xf32>
    %cst_24 = arith.constant dense<0xFF800000> : vector<8xf32>
    %73 = vector.multi_reduction <maximumf>, %72, %cst_24 [1] : vector<8x8xf32> to vector<8xf32>
    %74 = vector.shape_cast %73 : vector<8xf32> to vector<8x1xf32>
    %75 = vector.broadcast %74 : vector<8x1xf32> to vector<8x8xf32>
    %76 = arith.subf %72, %75 : vector<8x8xf32>
    %77 = math.exp %76 : vector<8x8xf32>
    %cst_25 = arith.constant dense<0.000000e+00> : vector<8xf32>
    %78 = vector.multi_reduction <add>, %77, %cst_25 [1] : vector<8x8xf32> to vector<8xf32>
    %79 = vector.shape_cast %78 : vector<8xf32> to vector<8x1xf32>
    %80 = tpu.reciprocal %79 {approx = true} : vector<8x1xf32> -> vector<8x1xf32>
    %81 = vector.broadcast %80 : vector<8x1xf32> to vector<8x8xf32>
    %82 = arith.mulf %77, %81 : vector<8x8xf32>
    %cst_26 = arith.constant dense<0.000000e+00> : vector<8x8xf32>
    %83 = tpu.matmul %82, %67, %cst_26 {dimension_numbers = #tpu.dot_dimension_numbers<[1], [0], [0], [1], [0, 0, 1, 1], [], []>} : vector<8x8xf32>, vector<8x8xf32>, vector<8x8xf32> -> vector<8x8xf32>
    %84 = tpu.concatenate %26, %45, %64, %83 in 1 : vector<8x8xf32>, vector<8x8xf32>, vector<8x8xf32>, vector<8x8xf32> -> vector<8x32xf32>
    %85 = vector.extract_strided_slice %1 {offsets = [1, 0], sizes = [1, 8], strides = [1, 1]} : vector<2x8xf32> to vector<1x8xf32>
    %86 = vector.extract_strided_slice %6 {offsets = [8, 0], sizes = [8, 8], strides = [1, 1]} : vector<16x96xf32> to vector<8x8xf32>
    %87 = vector.extract_strided_slice %6 {offsets = [8, 32], sizes = [8, 8], strides = [1, 1]} : vector<16x96xf32> to vector<8x8xf32>
    %88 = vector.extract_strided_slice %6 {offsets = [8, 64], sizes = [8, 8], strides = [1, 1]} : vector<16x96xf32> to vector<8x8xf32>
    %cst_27 = arith.constant dense<0.000000e+00> : vector<8x8xf32>
    %89 = tpu.matmul %86, %87, %cst_27 {dimension_numbers = #tpu.dot_dimension_numbers<[1], [1], [0], [0], [0, 0, 1, 0], [], []>} : vector<8x8xf32>, vector<8x8xf32>, vector<8x8xf32> -> vector<8x8xf32>
    %cst_28 = arith.constant 0.353553385 : f32
    %90 = vector.broadcast %cst_28 : f32 to vector<8x8xf32>
    %91 = arith.mulf %89, %90 : vector<8x8xf32>
    %92 = vector.broadcast %85 : vector<1x8xf32> to vector<8x8xf32>
    %93 = arith.addf %91, %92 : vector<8x8xf32>
    %cst_29 = arith.constant dense<0xFF800000> : vector<8xf32>
    %94 = vector.multi_reduction <maximumf>, %93, %cst_29 [1] : vector<8x8xf32> to vector<8xf32>
    %95 = vector.shape_cast %94 : vector<8xf32> to vector<8x1xf32>
    %96 = vector.broadcast %95 : vector<8x1xf32> to vector<8x8xf32>
    %97 = arith.subf %93, %96 : vector<8x8xf32>
    %98 = math.exp %97 : vector<8x8xf32>
    %cst_30 = arith.constant dense<0.000000e+00> : vector<8xf32>
    %99 = vector.multi_reduction <add>, %98, %cst_30 [1] : vector<8x8xf32> to vector<8xf32>
    %100 = vector.shape_cast %99 : vector<8xf32> to vector<8x1xf32>
    %101 = tpu.reciprocal %100 {approx = true} : vector<8x1xf32> -> vector<8x1xf32>
    %102 = vector.broadcast %101 : vector<8x1xf32> to vector<8x8xf32>
    %103 = arith.mulf %98, %102 : vector<8x8xf32>
    %cst_31 = arith.constant dense<0.000000e+00> : vector<8x8xf32>
    %104 = tpu.matmul %103, %88, %cst_31 {dimension_numbers = #tpu.dot_dimension_numbers<[1], [0], [0], [1], [0, 0, 1, 1], [], []>} : vector<8x8xf32>, vector<8x8xf32>, vector<8x8xf32> -> vector<8x8xf32>
    %105 = vector.extract_strided_slice %6 {offsets = [8, 8], sizes = [8, 8], strides = [1, 1]} : vector<16x96xf32> to vector<8x8xf32>
    %106 = vector.extract_strided_slice %6 {offsets = [8, 40], sizes = [8, 8], strides = [1, 1]} : vector<16x96xf32> to vector<8x8xf32>
    %107 = vector.extract_strided_slice %6 {offsets = [8, 72], sizes = [8, 8], strides = [1, 1]} : vector<16x96xf32> to vector<8x8xf32>
    %cst_32 = arith.constant dense<0.000000e+00> : vector<8x8xf32>
    %108 = tpu.matmul %105, %106, %cst_32 {dimension_numbers = #tpu.dot_dimension_numbers<[1], [1], [0], [0], [0, 0, 1, 0], [], []>} : vector<8x8xf32>, vector<8x8xf32>, vector<8x8xf32> -> vector<8x8xf32>
    %cst_33 = arith.constant 0.353553385 : f32
    %109 = vector.broadcast %cst_33 : f32 to vector<8x8xf32>
    %110 = arith.mulf %108, %109 : vector<8x8xf32>
    %111 = vector.broadcast %85 : vector<1x8xf32> to vector<8x8xf32>
    %112 = arith.addf %110, %111 : vector<8x8xf32>
    %cst_34 = arith.constant dense<0xFF800000> : vector<8xf32>
    %113 = vector.multi_reduction <maximumf>, %112, %cst_34 [1] : vector<8x8xf32> to vector<8xf32>
    %114 = vector.shape_cast %113 : vector<8xf32> to vector<8x1xf32>
    %115 = vector.broadcast %114 : vector<8x1xf32> to vector<8x8xf32>
    %116 = arith.subf %112, %115 : vector<8x8xf32>
    %117 = math.exp %116 : vector<8x8xf32>
    %cst_35 = arith.constant dense<0.000000e+00> : vector<8xf32>
    %118 = vector.multi_reduction <add>, %117, %cst_35 [1] : vector<8x8xf32> to vector<8xf32>
    %119 = vector.shape_cast %118 : vector<8xf32> to vector<8x1xf32>
    %120 = tpu.reciprocal %119 {approx = true} : vector<8x1xf32> -> vector<8x1xf32>
    %121 = vector.broadcast %120 : vector<8x1xf32> to vector<8x8xf32>
    %122 = arith.mulf %117, %121 : vector<8x8xf32>
    %cst_36 = arith.constant dense<0.000000e+00> : vector<8x8xf32>
    %123 = tpu.matmul %122, %107, %cst_36 {dimension_numbers = #tpu.dot_dimension_numbers<[1], [0], [0], [1], [0, 0, 1, 1], [], []>} : vector<8x8xf32>, vector<8x8xf32>, vector<8x8xf32> -> vector<8x8xf32>
    %124 = vector.extract_strided_slice %6 {offsets = [8, 16], sizes = [8, 8], strides = [1, 1]} : vector<16x96xf32> to vector<8x8xf32>
    %125 = vector.extract_strided_slice %6 {offsets = [8, 48], sizes = [8, 8], strides = [1, 1]} : vector<16x96xf32> to vector<8x8xf32>
    %126 = vector.extract_strided_slice %6 {offsets = [8, 80], sizes = [8, 8], strides = [1, 1]} : vector<16x96xf32> to vector<8x8xf32>
    %cst_37 = arith.constant dense<0.000000e+00> : vector<8x8xf32>
    %127 = tpu.matmul %124, %125, %cst_37 {dimension_numbers = #tpu.dot_dimension_numbers<[1], [1], [0], [0], [0, 0, 1, 0], [], []>} : vector<8x8xf32>, vector<8x8xf32>, vector<8x8xf32> -> vector<8x8xf32>
    %cst_38 = arith.constant 0.353553385 : f32
    %128 = vector.broadcast %cst_38 : f32 to vector<8x8xf32>
    %129 = arith.mulf %127, %128 : vector<8x8xf32>
    %130 = vector.broadcast %85 : vector<1x8xf32> to vector<8x8xf32>
    %131 = arith.addf %129, %130 : vector<8x8xf32>
    %cst_39 = arith.constant dense<0xFF800000> : vector<8xf32>
    %132 = vector.multi_reduction <maximumf>, %131, %cst_39 [1] : vector<8x8xf32> to vector<8xf32>
    %133 = vector.shape_cast %132 : vector<8xf32> to vector<8x1xf32>
    %134 = vector.broadcast %133 : vector<8x1xf32> to vector<8x8xf32>
    %135 = arith.subf %131, %134 : vector<8x8xf32>
    %136 = math.exp %135 : vector<8x8xf32>
    %cst_40 = arith.constant dense<0.000000e+00> : vector<8xf32>
    %137 = vector.multi_reduction <add>, %136, %cst_40 [1] : vector<8x8xf32> to vector<8xf32>
    %138 = vector.shape_cast %137 : vector<8xf32> to vector<8x1xf32>
    %139 = tpu.reciprocal %138 {approx = true} : vector<8x1xf32> -> vector<8x1xf32>
    %140 = vector.broadcast %139 : vector<8x1xf32> to vector<8x8xf32>
    %141 = arith.mulf %136, %140 : vector<8x8xf32>
    %cst_41 = arith.constant dense<0.000000e+00> : vector<8x8xf32>
    %142 = tpu.matmul %141, %126, %cst_41 {dimension_numbers = #tpu.dot_dimension_numbers<[1], [0], [0], [1], [0, 0, 1, 1], [], []>} : vector<8x8xf32>, vector<8x8xf32>, vector<8x8xf32> -> vector<8x8xf32>
    %143 = vector.extract_strided_slice %6 {offsets = [8, 24], sizes = [8, 8], strides = [1, 1]} : vector<16x96xf32> to vector<8x8xf32>
    %144 = vector.extract_strided_slice %6 {offsets = [8, 56], sizes = [8, 8], strides = [1, 1]} : vector<16x96xf32> to vector<8x8xf32>
    %145 = vector.extract_strided_slice %6 {offsets = [8, 88], sizes = [8, 8], strides = [1, 1]} : vector<16x96xf32> to vector<8x8xf32>
    %cst_42 = arith.constant dense<0.000000e+00> : vector<8x8xf32>
    %146 = tpu.matmul %143, %144, %cst_42 {dimension_numbers = #tpu.dot_dimension_numbers<[1], [1], [0], [0], [0, 0, 1, 0], [], []>} : vector<8x8xf32>, vector<8x8xf32>, vector<8x8xf32> -> vector<8x8xf32>
    %cst_43 = arith.constant 0.353553385 : f32
    %147 = vector.broadcast %cst_43 : f32 to vector<8x8xf32>
    %148 = arith.mulf %146, %147 : vector<8x8xf32>
    %149 = vector.broadcast %85 : vector<1x8xf32> to vector<8x8xf32>
    %150 = arith.addf %148, %149 : vector<8x8xf32>
    %cst_44 = arith.constant dense<0xFF800000> : vector<8xf32>
    %151 = vector.multi_reduction <maximumf>, %150, %cst_44 [1] : vector<8x8xf32> to vector<8xf32>
    %152 = vector.shape_cast %151 : vector<8xf32> to vector<8x1xf32>
    %153 = vector.broadcast %152 : vector<8x1xf32> to vector<8x8xf32>
    %154 = arith.subf %150, %153 : vector<8x8xf32>
    %155 = math.exp %154 : vector<8x8xf32>
    %cst_45 = arith.constant dense<0.000000e+00> : vector<8xf32>
    %156 = vector.multi_reduction <add>, %155, %cst_45 [1] : vector<8x8xf32> to vector<8xf32>
    %157 = vector.shape_cast %156 : vector<8xf32> to vector<8x1xf32>
    %158 = tpu.reciprocal %157 {approx = true} : vector<8x1xf32> -> vector<8x1xf32>
    %159 = vector.broadcast %158 : vector<8x1xf32> to vector<8x8xf32>
    %160 = arith.mulf %155, %159 : vector<8x8xf32>
    %cst_46 = arith.constant dense<0.000000e+00> : vector<8x8xf32>
    %161 = tpu.matmul %160, %145, %cst_46 {dimension_numbers = #tpu.dot_dimension_numbers<[1], [0], [0], [1], [0, 0, 1, 1], [], []>} : vector<8x8xf32>, vector<8x8xf32>, vector<8x8xf32> -> vector<8x8xf32>
    %162 = tpu.concatenate %104, %123, %142, %161 in 1 : vector<8x8xf32>, vector<8x8xf32>, vector<8x8xf32>, vector<8x8xf32> -> vector<8x32xf32>
    %163 = tpu.concatenate %84, %162 in 0 : vector<8x32xf32>, vector<8x32xf32> -> vector<16x32xf32>
    %c0_47 = arith.constant 0 : index
    %c0_48 = arith.constant 0 : index
    %164 = vector.load %arg4[%c0_47, %c0_48] : memref<32x32xf32, #tpu.memory_space<vmem>>, vector<32x32xf32>
    %cst_49 = arith.constant dense<0.000000e+00> : vector<16x32xf32>
    %165 = tpu.matmul %163, %164, %cst_49 {dimension_numbers = #tpu.dot_dimension_numbers<[1], [0], [0], [1], [0, 0, 1, 1], [], []>} : vector<16x32xf32>, vector<32x32xf32>, vector<16x32xf32> -> vector<16x32xf32>
    %c0_50 = arith.constant 0 : index
    %c0_51 = arith.constant 0 : index
    %166 = vector.load %arg5[%c0_50, %c0_51] : memref<1x32xf32, #tpu.memory_space<vmem>>, vector<1x32xf32>
    %167 = vector.broadcast %166 : vector<1x32xf32> to vector<16x32xf32>
    %168 = arith.addf %165, %167 : vector<16x32xf32>
    %169 = arith.addf %168, %0 : vector<16x32xf32>
    %c0_52 = arith.constant 0 : index
    %c0_53 = arith.constant 0 : index
    %170 = vector.load %arg6[%c0_52, %c0_53] : memref<1x32xf32, #tpu.memory_space<vmem>>, vector<1x32xf32>
    %c0_54 = arith.constant 0 : index
    %c0_55 = arith.constant 0 : index
    %171 = vector.load %arg7[%c0_54, %c0_55] : memref<1x32xf32, #tpu.memory_space<vmem>>, vector<1x32xf32>
    %cst_56 = arith.constant dense<0.000000e+00> : vector<16xf32>
    %172 = vector.multi_reduction <add>, %169, %cst_56 [1] : vector<16x32xf32> to vector<16xf32>
    %173 = vector.shape_cast %172 : vector<16xf32> to vector<16x1xf32>
    %cst_57 = arith.constant 3.200000e+01 : f32
    %174 = vector.broadcast %cst_57 : f32 to vector<16x1xf32>
    %175 = arith.divf %173, %174 : vector<16x1xf32>
    %176 = vector.broadcast %175 : vector<16x1xf32> to vector<16x32xf32>
    %177 = arith.subf %169, %176 : vector<16x32xf32>
    %178 = arith.mulf %177, %177 : vector<16x32xf32>
    %cst_58 = arith.constant dense<0.000000e+00> : vector<16xf32>
    %179 = vector.multi_reduction <add>, %178, %cst_58 [1] : vector<16x32xf32> to vector<16xf32>
    %180 = vector.shape_cast %179 : vector<16xf32> to vector<16x1xf32>
    %cst_59 = arith.constant 3.200000e+01 : f32
    %181 = vector.broadcast %cst_59 : f32 to vector<16x1xf32>
    %182 = arith.divf %180, %181 : vector<16x1xf32>
    %cst_60 = arith.constant 9.99999996E-13 : f32
    %183 = vector.broadcast %cst_60 : f32 to vector<16x1xf32>
    %184 = arith.addf %182, %183 : vector<16x1xf32>
    %185 = math.rsqrt %184 : vector<16x1xf32>
    %186 = vector.broadcast %185 : vector<16x1xf32> to vector<16x32xf32>
    %187 = arith.mulf %177, %186 : vector<16x32xf32>
    %188 = vector.broadcast %170 : vector<1x32xf32> to vector<16x32xf32>
    %189 = arith.mulf %187, %188 : vector<16x32xf32>
    %190 = vector.broadcast %171 : vector<1x32xf32> to vector<16x32xf32>
    %191 = arith.addf %189, %190 : vector<16x32xf32>
    %c0_61 = arith.constant 0 : index
    %c0_62 = arith.constant 0 : index
    %192 = vector.load %arg8[%c0_61, %c0_62] : memref<32x128xf32, #tpu.memory_space<vmem>>, vector<32x128xf32>
    %cst_63 = arith.constant dense<0.000000e+00> : vector<16x128xf32>
    %193 = tpu.matmul %191, %192, %cst_63 {dimension_numbers = #tpu.dot_dimension_numbers<[1], [0], [0], [1], [0, 0, 1, 1], [], []>} : vector<16x32xf32>, vector<32x128xf32>, vector<16x128xf32> -> vector<16x128xf32>
    %c0_64 = arith.constant 0 : index
    %c0_65 = arith.constant 0 : index
    %194 = vector.load %arg9[%c0_64, %c0_65] : memref<1x128xf32, #tpu.memory_space<vmem>>, vector<1x128xf32>
    %195 = vector.broadcast %194 : vector<1x128xf32> to vector<16x128xf32>
    %196 = arith.addf %193, %195 : vector<16x128xf32>
    %cst_66 = arith.constant 5.000000e-01 : f32
    %197 = vector.broadcast %cst_66 : f32 to vector<16x128xf32>
    %198 = arith.mulf %197, %196 : vector<16x128xf32>
    %cst_67 = arith.constant 0.707106769 : f32
    %199 = vector.broadcast %cst_67 : f32 to vector<16x128xf32>
    %200 = arith.mulf %196, %199 : vector<16x128xf32>
    %201 = math.absf %200 : vector<16x128xf32>
    %cst_68 = arith.constant 0.327591091 : f32
    %202 = vector.broadcast %cst_68 : f32 to vector<16x128xf32>
    %203 = arith.mulf %202, %201 : vector<16x128xf32>
    %cst_69 = arith.constant 1.000000e+00 : f32
    %204 = vector.broadcast %cst_69 : f32 to vector<16x128xf32>
    %205 = arith.addf %204, %203 : vector<16x128xf32>
    %cst_70 = arith.constant 1.000000e+00 : f32
    %206 = vector.broadcast %cst_70 : f32 to vector<16x128xf32>
    %207 = arith.divf %206, %205 : vector<16x128xf32>
    %cst_71 = arith.constant 1.06140542 : f32
    %208 = vector.broadcast %cst_71 : f32 to vector<16x128xf32>
    %209 = arith.mulf %208, %207 : vector<16x128xf32>
    %cst_72 = arith.constant 1.45315206 : f32
    %210 = vector.broadcast %cst_72 : f32 to vector<16x128xf32>
    %211 = arith.subf %209, %210 : vector<16x128xf32>
    %212 = arith.mulf %211, %207 : vector<16x128xf32>
    %cst_73 = arith.constant 1.42141378 : f32
    %213 = vector.broadcast %cst_73 : f32 to vector<16x128xf32>
    %214 = arith.addf %212, %213 : vector<16x128xf32>
    %215 = arith.mulf %214, %207 : vector<16x128xf32>
    %cst_74 = arith.constant 0.284496725 : f32
    %216 = vector.broadcast %cst_74 : f32 to vector<16x128xf32>
    %217 = arith.subf %215, %216 : vector<16x128xf32>
    %218 = arith.mulf %217, %207 : vector<16x128xf32>
    %cst_75 = arith.constant 0.254829586 : f32
    %219 = vector.broadcast %cst_75 : f32 to vector<16x128xf32>
    %220 = arith.addf %218, %219 : vector<16x128xf32>
    %221 = arith.mulf %220, %207 : vector<16x128xf32>
    %222 = arith.mulf %200, %200 : vector<16x128xf32>
    %cst_76 = arith.constant 0.000000e+00 : f32
    %223 = vector.broadcast %cst_76 : f32 to vector<16x128xf32>
    %224 = arith.subf %223, %222 : vector<16x128xf32>
    %225 = math.exp %224 : vector<16x128xf32>
    %226 = arith.mulf %221, %225 : vector<16x128xf32>
    %cst_77 = arith.constant 1.000000e+00 : f32
    %227 = vector.broadcast %cst_77 : f32 to vector<16x128xf32>
    %228 = arith.subf %227, %226 : vector<16x128xf32>
    %cst_78 = arith.constant 0.000000e+00 : f32
    %229 = vector.broadcast %cst_78 : f32 to vector<16x128xf32>
    %230 = arith.cmpf oge, %200, %229 : vector<16x128xf32>
    %cst_79 = arith.constant 0.000000e+00 : f32
    %231 = vector.broadcast %cst_79 : f32 to vector<16x128xf32>
    %232 = arith.subf %231, %228 : vector<16x128xf32>
    %233 = arith.select %230, %228, %232 : vector<16x128xi1>, vector<16x128xf32>
    %cst_80 = arith.constant 1.000000e+00 : f32
    %234 = vector.broadcast %cst_80 : f32 to vector<16x128xf32>
    %235 = arith.addf %234, %233 : vector<16x128xf32>
    %236 = arith.mulf %198, %235 : vector<16x128xf32>
    %c0_81 = arith.constant 0 : index
    %c0_82 = arith.constant 0 : index
    %237 = vector.load %arg10[%c0_81, %c0_82] : memref<128x32xf32, #tpu.memory_space<vmem>>, vector<128x32xf32>
    %cst_83 = arith.constant dense<0.000000e+00> : vector<16x32xf32>
    %238 = tpu.matmul %236, %237, %cst_83 {dimension_numbers = #tpu.dot_dimension_numbers<[1], [0], [0], [1], [0, 0, 1, 1], [], []>} : vector<16x128xf32>, vector<128x32xf32>, vector<16x32xf32> -> vector<16x32xf32>
    %c0_84 = arith.constant 0 : index
    %c0_85 = arith.constant 0 : index
    %239 = vector.load %arg11[%c0_84, %c0_85] : memref<1x32xf32, #tpu.memory_space<vmem>>, vector<1x32xf32>
    %240 = vector.broadcast %239 : vector<1x32xf32> to vector<16x32xf32>
    %241 = arith.addf %238, %240 : vector<16x32xf32>
    %242 = arith.addf %241, %191 : vector<16x32xf32>
    %c0_86 = arith.constant 0 : index
    %c0_87 = arith.constant 0 : index
    %243 = vector.load %arg12[%c0_86, %c0_87] : memref<1x32xf32, #tpu.memory_space<vmem>>, vector<1x32xf32>
    %c0_88 = arith.constant 0 : index
    %c0_89 = arith.constant 0 : index
    %244 = vector.load %arg13[%c0_88, %c0_89] : memref<1x32xf32, #tpu.memory_space<vmem>>, vector<1x32xf32>
    %cst_90 = arith.constant dense<0.000000e+00> : vector<16xf32>
    %245 = vector.multi_reduction <add>, %242, %cst_90 [1] : vector<16x32xf32> to vector<16xf32>
    %246 = vector.shape_cast %245 : vector<16xf32> to vector<16x1xf32>
    %cst_91 = arith.constant 3.200000e+01 : f32
    %247 = vector.broadcast %cst_91 : f32 to vector<16x1xf32>
    %248 = arith.divf %246, %247 : vector<16x1xf32>
    %249 = vector.broadcast %248 : vector<16x1xf32> to vector<16x32xf32>
    %250 = arith.subf %242, %249 : vector<16x32xf32>
    %251 = arith.mulf %250, %250 : vector<16x32xf32>
    %cst_92 = arith.constant dense<0.000000e+00> : vector<16xf32>
    %252 = vector.multi_reduction <add>, %251, %cst_92 [1] : vector<16x32xf32> to vector<16xf32>
    %253 = vector.shape_cast %252 : vector<16xf32> to vector<16x1xf32>
    %cst_93 = arith.constant 3.200000e+01 : f32
    %254 = vector.broadcast %cst_93 : f32 to vector<16x1xf32>
    %255 = arith.divf %253, %254 : vector<16x1xf32>
    %cst_94 = arith.constant 9.99999996E-13 : f32
    %256 = vector.broadcast %cst_94 : f32 to vector<16x1xf32>
    %257 = arith.addf %255, %256 : vector<16x1xf32>
    %258 = math.rsqrt %257 : vector<16x1xf32>
    %259 = vector.broadcast %258 : vector<16x1xf32> to vector<16x32xf32>
    %260 = arith.mulf %250, %259 : vector<16x32xf32>
    %261 = vector.broadcast %243 : vector<1x32xf32> to vector<16x32xf32>
    %262 = arith.mulf %260, %261 : vector<16x32xf32>
    %263 = vector.broadcast %244 : vector<1x32xf32> to vector<16x32xf32>
    %264 = arith.addf %262, %263 : vector<16x32xf32>
    %c0_95 = arith.constant 0 : index
    %c0_96 = arith.constant 0 : index
    %265 = vector.load %arg14[%c0_95, %c0_96] : memref<16x32xf32, #tpu.memory_space<vmem>>, vector<16x32xf32>
    tpu.vector_store %arg14[%c0_95, %c0_96], %264 {strides = array<i32>} : memref<16x32xf32, #tpu.memory_space<vmem>>, vector<16x32xf32>,
    return
  }
}

module attributes {stable_mosaic.version = 11 : i64} {
  func.func @_pooler_cls_kernel(%arg0: memref<2x32xf32, #tpu.memory_space<vmem>>, %arg1: memref<32x32xf32, #tpu.memory_space<vmem>>, %arg2: memref<1x32xf32, #tpu.memory_space<vmem>>, %arg3: memref<32x128xf32, #tpu.memory_space<vmem>>, %arg4: memref<1x128xf32, #tpu.memory_space<vmem>>, %arg5: memref<2x128xf32, #tpu.memory_space<vmem>>) attributes {dimension_semantics = [], scalar_prefetch = 0 : i64, scratch_operands = 0 : i64, tpu.core_type = #tpu.core_type<tc>} {
    %c0 = arith.constant 0 : index
    %c0_0 = arith.constant 0 : index
    %0 = vector.load %arg0[%c0, %c0_0] : memref<2x32xf32, #tpu.memory_space<vmem>>, vector<2x32xf32>
    %c0_1 = arith.constant 0 : index
    %c0_2 = arith.constant 0 : index
    %1 = vector.load %arg1[%c0_1, %c0_2] : memref<32x32xf32, #tpu.memory_space<vmem>>, vector<32x32xf32>
    %cst = arith.constant dense<0.000000e+00> : vector<2x32xf32>
    %2 = tpu.matmul %0, %1, %cst {dimension_numbers = #tpu.dot_dimension_numbers<[1], [0], [0], [1], [0, 0, 1, 1], [], []>} : vector<2x32xf32>, vector<32x32xf32>, vector<2x32xf32> -> vector<2x32xf32>
    %c0_3 = arith.constant 0 : index
    %c0_4 = arith.constant 0 : index
    %3 = vector.load %arg2[%c0_3, %c0_4] : memref<1x32xf32, #tpu.memory_space<vmem>>, vector<1x32xf32>
    %4 = vector.broadcast %3 : vector<1x32xf32> to vector<2x32xf32>
    %5 = arith.addf %2, %4 : vector<2x32xf32>
    %6 = math.tanh %5 : vector<2x32xf32>
    %c0_5 = arith.constant 0 : index
    %c0_6 = arith.constant 0 : index
    %7 = vector.load %arg3[%c0_5, %c0_6] : memref<32x128xf32, #tpu.memory_space<vmem>>, vector<32x128xf32>
    %cst_7 = arith.constant dense<0.000000e+00> : vector<2x128xf32>
    %8 = tpu.matmul %6, %7, %cst_7 {dimension_numbers = #tpu.dot_dimension_numbers<[1], [0], [0], [1], [0, 0, 1, 1], [], []>} : vector<2x32xf32>, vector<32x128xf32>, vector<2x128xf32> -> vector<2x128xf32>
    %c0_8 = arith.constant 0 : index
    %c0_9 = arith.constant 0 : index
    %9 = vector.load %arg4[%c0_8, %c0_9] : memref<1x128xf32, #tpu.memory_space<vmem>>, vector<1x128xf32>
    %10 = vector.broadcast %9 : vector<1x128xf32> to vector<2x128xf32>
    %11 = arith.addf %8, %10 : vector<2x128xf32>
    %c0_10 = arith.constant 0 : index
    %c0_11 = arith.constant 0 : index
    %12 = vector.load %arg5[%c0_10, %c0_11] : memref<2x128xf32, #tpu.memory_space<vmem>>, vector<2x128xf32>
    tpu.vector_store %arg5[%c0_10, %c0_11], %11 {strides = array<i32>} : memref<2x128xf32, #tpu.memory_space<vmem>>, vector<2x128xf32>,
    return
  }
}

</mosaic_0001>

<llo_original>
// kernel: twitter_bert_forward.7
$region0: #{twitter_bert_forward.7}
  #allocation0 [shape = 'u32[]', space=smem, size = 0x4, offset = 0x4, fixed_abs, tag = 'smem constant byte address 0x4 - core index']
  #allocation1 [shape = 'u32[144,128]{1,0:T(1,128)}', space=vmem, size = 0x12000, scoped, tag = 'internal scratch']
  %s0 = inlined_call_operand.vmem [shape: f32[2,32], index: 0, kind: input, shape index: {}]
  %s1 = inlined_call_operand.vmem [shape: f32[32,32], index: 1, kind: input, shape index: {}]
  %s2 = inlined_call_operand.vmem [shape: f32[1,32], index: 2, kind: input, shape index: {}]
  %s3 = inlined_call_operand.vmem [shape: f32[32,128], index: 3, kind: input, shape index: {}]
  %s4 = inlined_call_operand.vmem [shape: f32[1,128], index: 4, kind: input, shape index: {}]
  %s5 = inlined_call_operand.hbm [shape: f32[2,128], index: 5, kind: output, shape index: {}]
  %s6 = sld [smem:[#allocation0]]
  $region30: #{twitter_bert_forward.7} parent=0
    _
  %s8 = ssub.s32 1, %s6
  %s9 = scalar_select 0, %s8, %s6
  $region1: #{twitter_bert_forward.7} parent=0
    #allocation2 [shape = 'u8[1024]{0}', space=vmem, size = 0x400, scoped, tag = 'output window, operand 0, single buffered']
    #allocation3 [shape = 's32[1]{0}', space=sflag, size = 0x4, scoped, tag = 'scoped memory for twitter_bert_forward.7']
    %10 = vsyncpa [#allocation3], 0
    // Predicated region
    $region2: #{twitter_bert_forward.7} parent=1 // pred_check
      _
    $region3: #{twitter_bert_forward.7} parent=1 // pred_check_branch
      %12 = sbr.rel (0) target = $region5
    $region4: #{twitter_bert_forward.7} parent=1 // pred_region
      _
    $region5: #{twitter_bert_forward.7} parent=1 // pred_fallthru
      _
    // Predicated region
    $region6: #{twitter_bert_forward.7} parent=1 // pred_check
      _
    $region7: #{twitter_bert_forward.7} parent=1 // pred_check_branch
      %14 = sbr.rel (0) target = $region9
    $region8: #{twitter_bert_forward.7} parent=1 // pred_region
      _
    $region9: #{twitter_bert_forward.7} parent=1 // pred_fallthru
      _
    // Predicated region
    $region10: #{twitter_bert_forward.7} parent=1 // pred_check
      _
    $region11: #{twitter_bert_forward.7} parent=1 // pred_check_branch
      %16 = sbr.rel (0) target = $region13
    $region12: #{twitter_bert_forward.7} parent=1 // pred_region
      _
    $region13: #{twitter_bert_forward.7} parent=1 // pred_fallthru
      _
    // Predicated region
    $region14: #{twitter_bert_forward.7} parent=1 // pred_check
      _
    $region15: #{twitter_bert_forward.7} parent=1 // pred_check_branch
      %18 = sbr.rel (0) target = $region17
    $region16: #{twitter_bert_forward.7} parent=1 // pred_region
      _
    $region17: #{twitter_bert_forward.7} parent=1 // pred_fallthru
      _
    // Predicated region
    $region18: #{twitter_bert_forward.7} parent=1 // pred_check
      _
    $region19: #{twitter_bert_forward.7} parent=1 // pred_check_branch
      %20 = sbr.rel (0) target = $region21
    $region20: #{twitter_bert_forward.7} parent=1 // pred_region
      _
    $region21: #{twitter_bert_forward.7} parent=1 // pred_fallthru
      _
    %v21 = vld [vmem:[%s0] sm:$0x3]
    %v22 = vld [vmem:[%s1] sm:$0xff]
    %v23 = vld [vmem:[%s1 + $0x8] sm:$0xff]
    %v24 = vld [vmem:[%s1 + $0x10] sm:$0xff]
    %v25 = vld [vmem:[%s1 + $0x18] sm:$0xff]
    %v26 = vld [vmem:[%s2] sm:$0x1]
    %v28 = vlaneseq
    %v29 = vshrl.u32 %v28, 7
    %v30 = vsub.s32 0, %v29
    %v31 = vrot.slane %v26, %v30
    %vm33 = vcmask 261120
    %v35 = vsel %vm33, %v21, 0
    %37 = vmatprep.subr.mxu0 0.0
    %38 = vmatpush1.msra.mxu0 %v22
    %39 = vmatprep.subr.mxu0 0.0
    %40 = vmatpush1.msra.mxu0 %v23
    %41 = vmatprep.subr.mxu0 0.0
    %42 = vmatpush1.msra.mxu0 %v24
    %43 = vmatprep.subr.mxu0 0.0
    %44 = vmatpush1.msra.mxu0 %v25
    %45 = vmatprep.subr.mxu0 0.0
    %46 = vmatpush1.msra.mxu0 0.0
    %47 = vmatprep.subr.mxu0 0.0
    %48 = vmatpush1.msra.mxu0 0.0
    %49 = vmatprep.subr.mxu0 0.0
    %50 = vmatpush1.msra.mxu0 0.0
    %51 = vmatprep.subr.mxu0 0.0
    %52 = vmatpush1.msra.mxu0 0.0
    %53 = vmatprep.subr.mxu0 0.0
    %54 = vmatpush1.msra.mxu0 0.0
    %55 = vmatprep.subr.mxu0 0.0
    %56 = vmatpush1.msra.mxu0 0.0
    %57 = vmatprep.subr.mxu0 0.0
    %58 = vmatpush1.msra.mxu0 0.0
    %59 = vmatprep.subr.mxu0 0.0
    %60 = vmatpush1.msra.mxu0 0.0
    %61 = vmatprep.subr.mxu0 0.0
    %62 = vmatpush1.msra.mxu0 0.0
    %63 = vmatprep.subr.mxu0 0.0
    %64 = vmatpush1.msra.mxu0 0.0
    %65 = vmatprep.subr.mxu0 0.0
    %66 = vmatpush1.msra.mxu0 0.0
    %67 = vmatprep.subr.mxu0 0.0
    %68 = vmatpush1.msra.mxu0 0.0
    %69 = vmatprep.subr.mxu0 0.0
    %70 = vmatpush1.msra.mxu0 0.0
    %71 = vmatprep.subr.mxu0 0.0
    %72 = vmatpush1.msra.mxu0 0.0
    %73 = vmatprep.subr.mxu0 0.0
    %74 = vmatpush1.msra.mxu0 0.0
    %75 = vmatprep.subr.mxu0 0.0
    %76 = vmatpush1.msra.mxu0 0.0
    %77 = vmatprep.subr.mxu0 0.0
    %78 = vmatpush1.msra.mxu0 0.0
    %79 = vmatprep.subr.mxu0 0.0
    %80 = vmatpush1.msra.mxu0 0.0
    %81 = vmatprep.subr.mxu0 0.0
    %82 = vmatpush1.msra.mxu0 0.0
    %83 = vmatprep.subr.mxu0 0.0
    %84 = vmatpush1.msra.mxu0 0.0
    %85 = vmatprep.subr.mxu0 0.0
    %86 = vmatpush1.msra.mxu0 0.0
    %87 = vmatprep.subr.mxu0 0.0
    %88 = vmatpush1.msra.mxu0 0.0
    %89 = vmatprep.subr.mxu0 0.0
    %90 = vmatpush1.msra.mxu0 0.0
    %91 = vmatprep.subr.mxu0 0.0
    %92 = vmatpush1.msra.mxu0 0.0
    %93 = vmatprep.subr.mxu0 0.0
    %94 = vmatpush1.msra.mxu0 0.0
    %95 = vmatprep.subr.mxu0 0.0
    %96 = vmatpush1.msra.mxu0 0.0
    %97 = vmatprep.subr.mxu0 0.0
    %98 = vmatpush1.msra.mxu0 0.0
    %99 = vmatprep.subr.mxu0 0.0
    %100 = vmatpush1.msra.mxu0 0.0
    %101 = vmatprep.mubr.f32.mxu0 0.0
    %102 = vmatmul.mubr.f32.gmra.mrb[0].mxu0 %v35
    %v103 = vpop.f32.mrb[0].mxu0
    %v104 = vadd.f32 %v31, %v103
    %v105 = vpop.f32.mrb[0].mxu0
    %106 = vdwg.mxu0
    %v107 = vtanh.pop %v104
    %v108 = vld [vmem:[%s3] sm:$0xff]
    %v109 = vld [vmem:[%s3 + $0x8] sm:$0xff]
    %v110 = vld [vmem:[%s3 + $0x10] sm:$0xff]
    %v111 = vld [vmem:[%s3 + $0x18] sm:$0xff]
    %v112 = vld [vmem:[%s4] sm:$0x1]
    %v114 = vlaneseq
    %v115 = vshrl.u32 %v114, 7
    %v116 = vsub.s32 0, %v115
    %v117 = vrot.slane %v112, %v116
    %v120 = vsel %vm33, %v107, 0
    %122 = vmatprep.subr.mxu0 0.0
    %123 = vmatpush1.msra.mxu0 %v108
    %124 = vmatprep.subr.mxu0 0.0
    %125 = vmatpush1.msra.mxu0 %v109
    %126 = vmatprep.subr.mxu0 0.0
    %127 = vmatpush1.msra.mxu0 %v110
    %128 = vmatprep.subr.mxu0 0.0
    %129 = vmatpush1.msra.mxu0 %v111
    %130 = vmatprep.subr.mxu0 0.0
    %131 = vmatpush1.msra.mxu0 0.0
    %132 = vmatprep.subr.mxu0 0.0
    %133 = vmatpush1.msra.mxu0 0.0
    %134 = vmatprep.subr.mxu0 0.0
    %135 = vmatpush1.msra.mxu0 0.0
    %136 = vmatprep.subr.mxu0 0.0
    %137 = vmatpush1.msra.mxu0 0.0
    %138 = vmatprep.subr.mxu0 0.0
    %139 = vmatpush1.msra.mxu0 0.0
    %140 = vmatprep.subr.mxu0 0.0
    %141 = vmatpush1.msra.mxu0 0.0
    %142 = vmatprep.subr.mxu0 0.0
    %143 = vmatpush1.msra.mxu0 0.0
    %144 = vmatprep.subr.mxu0 0.0
    %145 = vmatpush1.msra.mxu0 0.0
    %146 = vmatprep.subr.mxu0 0.0
    %147 = vmatpush1.msra.mxu0 0.0
    %148 = vmatprep.subr.mxu0 0.0
    %149 = vmatpush1.msra.mxu0 0.0
    %150 = vmatprep.subr.mxu0 0.0
    %151 = vmatpush1.msra.mxu0 0.0
    %152 = vmatprep.subr.mxu0 0.0
    %153 = vmatpush1.msra.mxu0 0.0
    %154 = vmatprep.subr.mxu0 0.0
    %155 = vmatpush1.msra.mxu0 0.0
    %156 = vmatprep.subr.mxu0 0.0
    %157 = vmatpush1.msra.mxu0 0.0
    %158 = vmatprep.subr.mxu0 0.0
    %159 = vmatpush1.msra.mxu0 0.0
    %160 = vmatprep.subr.mxu0 0.0
    %161 = vmatpush1.msra.mxu0 0.0
    %162 = vmatprep.subr.mxu0 0.0
    %163 = vmatpush1.msra.mxu0 0.0
    %164 = vmatprep.subr.mxu0 0.0
    %165 = vmatpush1.msra.mxu0 0.0
    %166 = vmatprep.subr.mxu0 0.0
    %167 = vmatpush1.msra.mxu0 0.0
    %168 = vmatprep.subr.mxu0 0.0
    %169 = vmatpush1.msra.mxu0 0.0
    %170 = vmatprep.subr.mxu0 0.0
    %171 = vmatpush1.msra.mxu0 0.0
    %172 = vmatprep.subr.mxu0 0.0
    %173 = vmatpush1.msra.mxu0 0.0
    %174 = vmatprep.subr.mxu0 0.0
    %175 = vmatpush1.msra.mxu0 0.0
    %176 = vmatprep.subr.mxu0 0.0
    %177 = vmatpush1.msra.mxu0 0.0
    %178 = vmatprep.subr.mxu0 0.0
    %179 = vmatpush1.msra.mxu0 0.0
    %180 = vmatprep.subr.mxu0 0.0
    %181 = vmatpush1.msra.mxu0 0.0
    %182 = vmatprep.subr.mxu0 0.0
    %183 = vmatpush1.msra.mxu0 0.0
    %184 = vmatprep.subr.mxu0 0.0
    %185 = vmatpush1.msra.mxu0 0.0
    %186 = vmatprep.mubr.f32.mxu0 0.0
    %187 = vmatmul.mubr.f32.gmra.mrb[0].mxu0 %v120
    %v188 = vpop.f32.mrb[0].mxu0
    %v189 = vadd.f32 %v117, %v188
    %v190 = vpop.f32.mrb[0].mxu0
    %191 = vdwg.mxu0
    %192 = vst [vmem:[#allocation2] sm:$0x3] %v189
    // Predicated region
    $region22: #{twitter_bert_forward.7} parent=1 // pred_check
      _
    $region23: #{twitter_bert_forward.7} parent=1 // pred_check_branch
      %194 = sbr.rel (0) target = $region25
    $region24: #{twitter_bert_forward.7} parent=1 // pred_region
      %s196 = ssub.s32 32, 32
      %197 = vsyncadd [#allocation3], %s196
      %s199 = sshll.u32 [#allocation2], 4
      %s200 = int_to_ptr.vmem [resolvable:$true] %s199
      %202 = dma.vmem_to_hbm [thread:$0]  %s200, 32, %s5, [#allocation3]
    $region25: #{twitter_bert_forward.7} parent=1 // pred_fallthru
      _
    // Predicated region
    $region26: #{twitter_bert_forward.7} parent=1 // pred_check
      _
    $region27: #{twitter_bert_forward.7} parent=1 // pred_check_branch
      %204 = sbr.rel (0) target = $region29
    $region28: #{twitter_bert_forward.7} parent=1 // pred_region
      %205 = dma.done [#allocation3], 32
    $region29: #{twitter_bert_forward.7} parent=1 // pred_fallthru
      _
    %206 = vsyncpa [#allocation3], 1

// kernel: twitter_bert_forward.4
$region0: #{twitter_bert_forward.4}
  #allocation0 [shape = 'u32[]', space=smem, size = 0x4, offset = 0x4, fixed_abs, tag = 'smem constant byte address 0x4 - core index']
  #allocation1 [shape = 'u32[144,128]{1,0:T(1,128)}', space=vmem, size = 0x12000, scoped, tag = 'internal scratch']
  %s0 = inlined_call_operand.vmem [shape: f32[16,32], index: 0, kind: input, shape index: {}]
  %s1 = inlined_call_operand.vmem [shape: f32[1,32], index: 1, kind: input, shape index: {}]
  %s2 = inlined_call_operand.vmem [shape: f32[1,32], index: 2, kind: input, shape index: {}]
  %s3 = inlined_call_operand.vmem [shape: f32[16,32], index: 3, kind: output, shape index: {}]
  %s4 = sld [smem:[#allocation0]]
  $region22: #{twitter_bert_forward.4} parent=0
    _
  %s6 = ssub.s32 1, %s4
  %s7 = scalar_select 0, %s6, %s4
  // Predicated region
  $region2: #{twitter_bert_forward.4} parent=0 // pred_check
    _
  $region3: #{twitter_bert_forward.4} parent=0 // pred_check_branch
    %9 = sbr.rel (0) target = $region5
  $region4: #{twitter_bert_forward.4} parent=0 // pred_region
    _
  $region5: #{twitter_bert_forward.4} parent=0 // pred_fallthru
    _
  // Predicated region
  $region6: #{twitter_bert_forward.4} parent=0 // pred_check
    _
  $region7: #{twitter_bert_forward.4} parent=0 // pred_check_branch
    %11 = sbr.rel (0) target = $region9
  $region8: #{twitter_bert_forward.4} parent=0 // pred_region
    _
  $region9: #{twitter_bert_forward.4} parent=0 // pred_fallthru
    _
  // Predicated region
  $region10: #{twitter_bert_forward.4} parent=0 // pred_check
    _
  $region11: #{twitter_bert_forward.4} parent=0 // pred_check_branch
    %13 = sbr.rel (0) target = $region13
  $region12: #{twitter_bert_forward.4} parent=0 // pred_region
    _
  $region13: #{twitter_bert_forward.4} parent=0 // pred_fallthru
    _
  %v14 = vld [vmem:[%s0] sm:$0xff]
  %v15 = vld [vmem:[%s0 + $0x8] sm:$0xff]
  %v16 = vld [vmem:[%s1] sm:$0x1]
  %v17 = vld [vmem:[%s2] sm:$0x1]
  %vm18 = vcmask 261120
  %v19 = vsel %vm18, %v14, 0.0
  %20 = vadd.xlane.f32.xlu0 %v19
  %v21 = vpop.xlane.xlu0 %20
  %v22 = vsel %vm18, %v15, 0.0
  %23 = vadd.xlane.f32.xlu0 %v22
  %v24 = vpop.xlane.xlu0 %23
  %v25 = vrcp.pop 32.0
  %v26 = vmul.f32 %v21, %v25
  %v27 = vmul.f32 %v24, %v25
  %v28 = vsub.f32 %v14, %v26
  %v29 = vsub.f32 %v15, %v27
  %v30 = vmul.f32 %v28, %v28
  %v31 = vmul.f32 %v29, %v29
  %v32 = vsel %vm18, %v30, 0.0
  %33 = vadd.xlane.f32.xlu0 %v32
  %v34 = vpop.xlane.xlu0 %33
  %v35 = vsel %vm18, %v31, 0.0
  %36 = vadd.xlane.f32.xlu0 %v35
  %v37 = vpop.xlane.xlu0 %36
  %v38 = vmul.f32 %v34, %v25
  %v39 = vmul.f32 %v37, %v25
  %v40 = vadd.f32 %v38, 1e-12
  %v41 = vadd.f32 %v39, 1e-12
  %v42 = vrsqrt.pop %v40
  %v43 = vrsqrt.pop %v41
  %v44 = vmul.f32 %v28, %v42
  %v45 = vmul.f32 %v29, %v43
  %v47 = vlaneseq
  %v48 = vshrl.u32 %v47, 7
  %v49 = vsub.s32 0, %v48
  %v50 = vrot.slane %v16, %v49
  %v52 = vmul.f32 %v44, %v50
  %v53 = vmul.f32 %v45, %v50
  %v55 = vlaneseq
  %v56 = vshrl.u32 %v55, 7
  %v57 = vsub.s32 0, %v56
  %v58 = vrot.slane %v17, %v57
  %v60 = vadd.f32 %v52, %v58
  %v61 = vadd.f32 %v53, %v58
  %62 = vst.msk [vmem:[%s3] sm:$0xff] %vm18, %v60
  %63 = vst.msk [vmem:[%s3 + $0x8] sm:$0xff] %vm18, %v61
  // Predicated region
  $region14: #{twitter_bert_forward.4} parent=0 // pred_check
    _
  $region15: #{twitter_bert_forward.4} parent=0 // pred_check_branch
    %65 = sbr.rel (0) target = $region17
  $region16: #{twitter_bert_forward.4} parent=0 // pred_region
    _
  $region17: #{twitter_bert_forward.4} parent=0 // pred_fallthru
    _
  // Predicated region
  $region18: #{twitter_bert_forward.4} parent=0 // pred_check
    _
  $region19: #{twitter_bert_forward.4} parent=0 // pred_check_branch
    %67 = sbr.rel (0) target = $region21
  $region20: #{twitter_bert_forward.4} parent=0 // pred_region
    _
  $region21: #{twitter_bert_forward.4} parent=0 // pred_fallthru
    _

// kernel: twitter_bert_forward.5
$region0: #{twitter_bert_forward.5}
  #allocation0 [shape = 'u32[]', space=smem, size = 0x4, offset = 0x4, fixed_abs, tag = 'smem constant byte address 0x4 - core index']
  #allocation1 [shape = 'u32[144,128]{1,0:T(1,128)}', space=vmem, size = 0x12000, scoped, tag = 'internal scratch']
  %s0 = inlined_call_operand.vmem [shape: f32[16,32], index: 0, kind: input, shape index: {}]
  %s1 = inlined_call_operand.vmem [shape: f32[2,8], index: 1, kind: input, shape index: {}]
  %s2 = inlined_call_operand.vmem [shape: f32[32,96], index: 2, kind: input, shape index: {}]
  %s3 = inlined_call_operand.vmem [shape: f32[1,96], index: 3, kind: input, shape index: {}]
  %s4 = inlined_call_operand.vmem [shape: f32[32,32], index: 4, kind: input, shape index: {}]
  %s5 = inlined_call_operand.vmem [shape: f32[1,32], index: 5, kind: input, shape index: {}]
  %s6 = inlined_call_operand.vmem [shape: f32[1,32], index: 6, kind: input, shape index: {}]
  %s7 = inlined_call_operand.vmem [shape: f32[1,32], index: 7, kind: input, shape index: {}]
  %s8 = inlined_call_operand.vmem [shape: f32[32,128], index: 8, kind: input, shape index: {}]
  %s9 = inlined_call_operand.vmem [shape: f32[1,128], index: 9, kind: input, shape index: {}]
  %s10 = inlined_call_operand.vmem [shape: f32[128,32], index: 10, kind: input, shape index: {}]
  %s11 = inlined_call_operand.vmem [shape: f32[1,32], index: 11, kind: input, shape index: {}]
  %s12 = inlined_call_operand.vmem [shape: f32[1,32], index: 12, kind: input, shape index: {}]
  %s13 = inlined_call_operand.vmem [shape: f32[1,32], index: 13, kind: input, shape index: {}]
  %s14 = inlined_call_operand.vmem [shape: f32[16,32], index: 14, kind: output, shape index: {}]
  %s15 = sld [smem:[#allocation0]]
  $region66: #{twitter_bert_forward.5} parent=0
    _
  %s17 = ssub.s32 1, %s15
  %s18 = scalar_select 0, %s17, %s15
  // Predicated region
  $region2: #{twitter_bert_forward.5} parent=0 // pred_check
    _
  $region3: #{twitter_bert_forward.5} parent=0 // pred_check_branch
    %20 = sbr.rel (0) target = $region5
  $region4: #{twitter_bert_forward.5} parent=0 // pred_region
    _
  $region5: #{twitter_bert_forward.5} parent=0 // pred_fallthru
    _
  // Predicated region
  $region6: #{twitter_bert_forward.5} parent=0 // pred_check
    _
  $region7: #{twitter_bert_forward.5} parent=0 // pred_check_branch
    %22 = sbr.rel (0) target = $region9
  $region8: #{twitter_bert_forward.5} parent=0 // pred_region
    _
  $region9: #{twitter_bert_forward.5} parent=0 // pred_fallthru
    _
  // Predicated region
  $region10: #{twitter_bert_forward.5} parent=0 // pred_check
    _
  $region11: #{twitter_bert_forward.5} parent=0 // pred_check_branch
    %24 = sbr.rel (0) target = $region13
  $region12: #{twitter_bert_forward.5} parent=0 // pred_region
    _
  $region13: #{twitter_bert_forward.5} parent=0 // pred_fallthru
    _
  // Predicated region
  $region14: #{twitter_bert_forward.5} parent=0 // pred_check
    _
  $region15: #{twitter_bert_forward.5} parent=0 // pred_check_branch
    %26 = sbr.rel (0) target = $region17
  $region16: #{twitter_bert_forward.5} parent=0 // pred_region
    _
  $region17: #{twitter_bert_forward.5} parent=0 // pred_fallthru
    _
  // Predicated region
  $region18: #{twitter_bert_forward.5} parent=0 // pred_check
    _
  $region19: #{twitter_bert_forward.5} parent=0 // pred_check_branch
    %28 = sbr.rel (0) target = $region21
  $region20: #{twitter_bert_forward.5} parent=0 // pred_region
    _
  $region21: #{twitter_bert_forward.5} parent=0 // pred_fallthru
    _
  // Predicated region
  $region22: #{twitter_bert_forward.5} parent=0 // pred_check
    _
  $region23: #{twitter_bert_forward.5} parent=0 // pred_check_branch
    %30 = sbr.rel (0) target = $region25
  $region24: #{twitter_bert_forward.5} parent=0 // pred_region
    _
  $region25: #{twitter_bert_forward.5} parent=0 // pred_fallthru
    _
  // Predicated region
  $region26: #{twitter_bert_forward.5} parent=0 // pred_check
    _
  $region27: #{twitter_bert_forward.5} parent=0 // pred_check_branch
    %32 = sbr.rel (0) target = $region29
  $region28: #{twitter_bert_forward.5} parent=0 // pred_region
    _
  $region29: #{twitter_bert_forward.5} parent=0 // pred_fallthru
    _
  // Predicated region
  $region30: #{twitter_bert_forward.5} parent=0 // pred_check
    _
  $region31: #{twitter_bert_forward.5} parent=0 // pred_check_branch
    %34 = sbr.rel (0) target = $region33
  $region32: #{twitter_bert_forward.5} parent=0 // pred_region
    _
  $region33: #{twitter_bert_forward.5} parent=0 // pred_fallthru
    _
  // Predicated region
  $region34: #{twitter_bert_forward.5} parent=0 // pred_check
    _
  $region35: #{twitter_bert_forward.5} parent=0 // pred_check_branch
    %36 = sbr.rel (0) target = $region37
  $region36: #{twitter_bert_forward.5} parent=0 // pred_region
    _
  $region37: #{twitter_bert_forward.5} parent=0 // pred_fallthru
    _
  // Predicated region
  $region38: #{twitter_bert_forward.5} parent=0 // pred_check
    _
  $region39: #{twitter_bert_forward.5} parent=0 // pred_check_branch
    %38 = sbr.rel (0) target = $region41
  $region40: #{twitter_bert_forward.5} parent=0 // pred_region
    _
  $region41: #{twitter_bert_forward.5} parent=0 // pred_fallthru
    _
  // Predicated region
  $region42: #{twitter_bert_forward.5} parent=0 // pred_check
    _
  $region43: #{twitter_bert_forward.5} parent=0 // pred_check_branch
    %40 = sbr.rel (0) target = $region45
  $region44: #{twitter_bert_forward.5} parent=0 // pred_region
    _
  $region45: #{twitter_bert_forward.5} parent=0 // pred_fallthru
    _
  // Predicated region
  $region46: #{twitter_bert_forward.5} parent=0 // pred_check
    _
  $region47: #{twitter_bert_forward.5} parent=0 // pred_check_branch
    %42 = sbr.rel (0) target = $region49
  $region48: #{twitter_bert_forward.5} parent=0 // pred_region
    _
  $region49: #{twitter_bert_forward.5} parent=0 // pred_fallthru
    _
  // Predicated region
  $region50: #{twitter_bert_forward.5} parent=0 // pred_check
    _
  $region51: #{twitter_bert_forward.5} parent=0 // pred_check_branch
    %44 = sbr.rel (0) target = $region53
  $region52: #{twitter_bert_forward.5} parent=0 // pred_region
    _
  $region53: #{twitter_bert_forward.5} parent=0 // pred_fallthru
    _
  // Predicated region
  $region54: #{twitter_bert_forward.5} parent=0 // pred_check
    _
  $region55: #{twitter_bert_forward.5} parent=0 // pred_check_branch
    %46 = sbr.rel (0) target = $region57
  $region56: #{twitter_bert_forward.5} parent=0 // pred_region
    _
  $region57: #{twitter_bert_forward.5} parent=0 // pred_fallthru
    _
  %v47 = vld [vmem:[%s0] sm:$0xff]
  %v48 = vld [vmem:[%s0 + $0x8] sm:$0xff]
  %v49 = vld [vmem:[%s1] sm:$0x3]
  %v50 = vld [vmem:[%s2] sm:$0xff]
  %v51 = vld [vmem:[%s2 + $0x8] sm:$0xff]
  %v52 = vld [vmem:[%s2 + $0x10] sm:$0xff]
  %v53 = vld [vmem:[%s2 + $0x18] sm:$0xff]
  %v54 = vld [vmem:[%s3] sm:$0x1]
  %v56 = vlaneseq
  %v57 = vshrl.u32 %v56, 7
  %v58 = vsub.s32 0, %v57
  %v59 = vrot.slane %v54, %v58
  %vm61 = vcmask 261120
  %v63 = vsel %vm61, %v47, 0
  %v66 = vsel %vm61, %v48, 0
  %68 = vmatprep.subr.mxu0 0.0
  %69 = vmatpush1.msra.mxu0 %v50
  %70 = vmatprep.subr.mxu0 0.0
  %71 = vmatpush1.msra.mxu0 %v51
  %72 = vmatprep.subr.mxu0 0.0
  %73 = vmatpush1.msra.mxu0 %v52
  %74 = vmatprep.subr.mxu0 0.0
  %75 = vmatpush1.msra.mxu0 %v53
  %76 = vmatprep.subr.mxu0 0.0
  %77 = vmatpush1.msra.mxu0 0.0
  %78 = vmatprep.subr.mxu0 0.0
  %79 = vmatpush1.msra.mxu0 0.0
  %80 = vmatprep.subr.mxu0 0.0
  %81 = vmatpush1.msra.mxu0 0.0
  %82 = vmatprep.subr.mxu0 0.0
  %83 = vmatpush1.msra.mxu0 0.0
  %84 = vmatprep.subr.mxu0 0.0
  %85 = vmatpush1.msra.mxu0 0.0
  %86 = vmatprep.subr.mxu0 0.0
  %87 = vmatpush1.msra.mxu0 0.0
  %88 = vmatprep.subr.mxu0 0.0
  %89 = vmatpush1.msra.mxu0 0.0
  %90 = vmatprep.subr.mxu0 0.0
  %91 = vmatpush1.msra.mxu0 0.0
  %92 = vmatprep.subr.mxu0 0.0
  %93 = vmatpush1.msra.mxu0 0.0
  %94 = vmatprep.subr.mxu0 0.0
  %95 = vmatpush1.msra.mxu0 0.0
  %96 = vmatprep.subr.mxu0 0.0
  %97 = vmatpush1.msra.mxu0 0.0
  %98 = vmatprep.subr.mxu0 0.0
  %99 = vmatpush1.msra.mxu0 0.0
  %100 = vmatprep.subr.mxu0 0.0
  %101 = vmatpush1.msra.mxu0 0.0
  %102 = vmatprep.subr.mxu0 0.0
  %103 = vmatpush1.msra.mxu0 0.0
  %104 = vmatprep.subr.mxu0 0.0
  %105 = vmatpush1.msra.mxu0 0.0
  %106 = vmatprep.subr.mxu0 0.0
  %107 = vmatpush1.msra.mxu0 0.0
  %108 = vmatprep.subr.mxu0 0.0
  %109 = vmatpush1.msra.mxu0 0.0
  %110 = vmatprep.subr.mxu0 0.0
  %111 = vmatpush1.msra.mxu0 0.0
  %112 = vmatprep.subr.mxu0 0.0
  %113 = vmatpush1.msra.mxu0 0.0
  %114 = vmatprep.subr.mxu0 0.0
  %115 = vmatpush1.msra.mxu0 0.0
  %116 = vmatprep.subr.mxu0 0.0
  %117 = vmatpush1.msra.mxu0 0.0
  %118 = vmatprep.subr.mxu0 0.0
  %119 = vmatpush1.msra.mxu0 0.0
  %120 = vmatprep.subr.mxu0 0.0
  %121 = vmatpush1.msra.mxu0 0.0
  %122 = vmatprep.subr.mxu0 0.0
  %123 = vmatpush1.msra.mxu0 0.0
  %124 = vmatprep.subr.mxu0 0.0
  %125 = vmatpush1.msra.mxu0 0.0
  %126 = vmatprep.subr.mxu0 0.0
  %127 = vmatpush1.msra.mxu0 0.0
  %128 = vmatprep.subr.mxu0 0.0
  %129 = vmatpush1.msra.mxu0 0.0
  %130 = vmatprep.subr.mxu0 0.0
  %131 = vmatpush1.msra.mxu0 0.0
  %132 = vmatprep.mubr.f32.mxu0 0.0
  %133 = vmatmul.mubr.f32.gmra.mrb[0].mxu0 %v63
  %v134 = vpop.f32.mrb[0].mxu0
  %v135 = vadd.f32 %v59, %v134
  %v136 = vpop.f32.mrb[0].mxu0
  %137 = vmatprep.mubr.f32.mxu0 0.0
  %138 = vmatmul.mubr.f32.gmra.mrb[0].mxu0 %v66
  %v139 = vpop.f32.mrb[0].mxu0
  %v140 = vadd.f32 %v59, %v139
  %v141 = vpop.f32.mrb[0].mxu0
  %142 = vdwg.mxu0
  %144 = vrot.lane.b32.xlu0 %v135, 96
  %v145 = vpop.permute.xlu0 %144
  %vm146 = vcmask 64512
  %v147 = vsel %vm146, %v135, 0
  %v149 = vsel %vm146, %v145, 0
  %151 = vmatprep.subr.mxu0 0.0
  %152 = vmatpush1.xpose.msra.mxu0 %v149
  %153 = vmatprep.subr.mxu0 0.0
  %154 = vmatpush1.xpose.msra.mxu0 0.0
  %155 = vmatprep.subr.mxu0 0.0
  %156 = vmatpush1.xpose.msra.mxu0 0.0
  %157 = vmatprep.subr.mxu0 0.0
  %158 = vmatpush1.xpose.msra.mxu0 0.0
  %159 = vmatprep.subr.mxu0 0.0
  %160 = vmatpush1.xpose.msra.mxu0 0.0
  %161 = vmatprep.subr.mxu0 0.0
  %162 = vmatpush1.xpose.msra.mxu0 0.0
  %163 = vmatprep.subr.mxu0 0.0
  %164 = vmatpush1.xpose.msra.mxu0 0.0
  %165 = vmatprep.subr.mxu0 0.0
  %166 = vmatpush1.xpose.msra.mxu0 0.0
  %167 = vmatprep.subr.mxu0 0.0
  %168 = vmatpush1.xpose.msra.mxu0 0.0
  %169 = vmatprep.subr.mxu0 0.0
  %170 = vmatpush1.xpose.msra.mxu0 0.0
  %171 = vmatprep.subr.mxu0 0.0
  %172 = vmatpush1.xpose.msra.mxu0 0.0
  %173 = vmatprep.subr.mxu0 0.0
  %174 = vmatpush1.xpose.msra.mxu0 0.0
  %175 = vmatprep.subr.mxu0 0.0
  %176 = vmatpush1.xpose.msra.mxu0 0.0
  %177 = vmatprep.subr.mxu0 0.0
  %178 = vmatpush1.xpose.msra.mxu0 0.0
  %179 = vmatprep.subr.mxu0 0.0
  %180 = vmatpush1.xpose.msra.mxu0 0.0
  %181 = vmatprep.subr.mxu0 0.0
  %182 = vmatpush1.xpose.msra.mxu0 0.0
  %183 = vmatprep.subr.mxu0 0.0
  %184 = vmatpush1.xpose.msra.mxu0 0.0
  %185 = vmatprep.subr.mxu0 0.0
  %186 = vmatpush1.xpose.msra.mxu0 0.0
  %187 = vmatprep.subr.mxu0 0.0
  %188 = vmatpush1.xpose.msra.mxu0 0.0
  %189 = vmatprep.subr.mxu0 0.0
  %190 = vmatpush1.xpose.msra.mxu0 0.0
  %191 = vmatprep.subr.mxu0 0.0
  %192 = vmatpush1.xpose.msra.mxu0 0.0
  %193 = vmatprep.subr.mxu0 0.0
  %194 = vmatpush1.xpose.msra.mxu0 0.0
  %195 = vmatprep.subr.mxu0 0.0
  %196 = vmatpush1.xpose.msra.mxu0 0.0
  %197 = vmatprep.subr.mxu0 0.0
  %198 = vmatpush1.xpose.msra.mxu0 0.0
  %199 = vmatprep.subr.mxu0 0.0
  %200 = vmatpush1.xpose.msra.mxu0 0.0
  %201 = vmatprep.subr.mxu0 0.0
  %202 = vmatpush1.xpose.msra.mxu0 0.0
  %203 = vmatprep.subr.mxu0 0.0
  %204 = vmatpush1.xpose.msra.mxu0 0.0
  %205 = vmatprep.subr.mxu0 0.0
  %206 = vmatpush1.xpose.msra.mxu0 0.0
  %207 = vmatprep.subr.mxu0 0.0
  %208 = vmatpush1.xpose.msra.mxu0 0.0
  %209 = vmatprep.subr.mxu0 0.0
  %210 = vmatpush1.xpose.msra.mxu0 0.0
  %211 = vmatprep.subr.mxu0 0.0
  %212 = vmatpush1.xpose.msra.mxu0 0.0
  %213 = vmatprep.subr.mxu0 0.0
  %214 = vmatpush1.xpose.msra.mxu0 0.0
  %215 = vmatprep.mubr.f32.mxu0 0.0
  %216 = vmatmul.mubr.f32.gmra.mrb[0].mxu0 %v147
  %v217 = vpop.f32.mrb[0].mxu0
  %v218 = vadd.f32 0.0, %v217
  %v219 = vpop.f32.mrb[0].mxu0
  %220 = vdwg.mxu0
  %v221 = vmul.f32 %v218, 0.35355338
  %v222 = vlaneseq
  %v223 = vshrl.u32 %v222, 7
  %v224 = vsub.s32 0, %v223
  %v225 = vrot.slane %v49, %v224
  %v226 = vadd.f32 %v221, %v225
  %v227 = vsel %vm146, %v226, -inf
  %228 = vmax.xlane.f32.xlu0 %v227
  %v229 = vpop.xlane.xlu0 %228
  %v230 = vsub.f32 %v226, %v229
  %v231 = vmul.f32 %v230, 1.442695
  %v232 = vpow.pop %v231
  %v233 = vsel %vm146, %v232, 0.0
  %234 = vadd.xlane.f32.xlu0 %v233
  %v235 = vpop.xlane.xlu0 %234
  %v236 = vrcp.pop %v235
  %v237 = vmul.f32 %v232, %v236
  %238 = vrot.lane.b32.xlu0 %v135, 64
  %v239 = vpop.permute.xlu0 %238
  %v242 = vsel %vm146, %v237, 0
  %244 = vmatprep.subr.mxu0 0.0
  %245 = vmatpush1.msra.mxu0 %v239
  %246 = vmatprep.subr.mxu0 0.0
  %247 = vmatpush1.msra.mxu0 0.0
  %248 = vmatprep.subr.mxu0 0.0
  %249 = vmatpush1.msra.mxu0 0.0
  %250 = vmatprep.subr.mxu0 0.0
  %251 = vmatpush1.msra.mxu0 0.0
  %252 = vmatprep.subr.mxu0 0.0
  %253 = vmatpush1.msra.mxu0 0.0
  %254 = vmatprep.subr.mxu0 0.0
  %255 = vmatpush1.msra.mxu0 0.0
  %256 = vmatprep.subr.mxu0 0.0
  %257 = vmatpush1.msra.mxu0 0.0
  %258 = vmatprep.subr.mxu0 0.0
  %259 = vmatpush1.msra.mxu0 0.0
  %260 = vmatprep.subr.mxu0 0.0
  %261 = vmatpush1.msra.mxu0 0.0
  %262 = vmatprep.subr.mxu0 0.0
  %263 = vmatpush1.msra.mxu0 0.0
  %264 = vmatprep.subr.mxu0 0.0
  %265 = vmatpush1.msra.mxu0 0.0
  %266 = vmatprep.subr.mxu0 0.0
  %267 = vmatpush1.msra.mxu0 0.0
  %268 = vmatprep.subr.mxu0 0.0
  %269 = vmatpush1.msra.mxu0 0.0
  %270 = vmatprep.subr.mxu0 0.0
  %271 = vmatpush1.msra.mxu0 0.0
  %272 = vmatprep.subr.mxu0 0.0
  %273 = vmatpush1.msra.mxu0 0.0
  %274 = vmatprep.subr.mxu0 0.0
  %275 = vmatpush1.msra.mxu0 0.0
  %276 = vmatprep.subr.mxu0 0.0
  %277 = vmatpush1.msra.mxu0 0.0
  %278 = vmatprep.subr.mxu0 0.0
  %279 = vmatpush1.msra.mxu0 0.0
  %280 = vmatprep.subr.mxu0 0.0
  %281 = vmatpush1.msra.mxu0 0.0
  %282 = vmatprep.subr.mxu0 0.0
  %283 = vmatpush1.msra.mxu0 0.0
  %284 = vmatprep.subr.mxu0 0.0
  %285 = vmatpush1.msra.mxu0 0.0
  %286 = vmatprep.subr.mxu0 0.0
  %287 = vmatpush1.msra.mxu0 0.0
  %288 = vmatprep.subr.mxu0 0.0
  %289 = vmatpush1.msra.mxu0 0.0
  %290 = vmatprep.subr.mxu0 0.0
  %291 = vmatpush1.msra.mxu0 0.0
  %292 = vmatprep.subr.mxu0 0.0
  %293 = vmatpush1.msra.mxu0 0.0
  %294 = vmatprep.subr.mxu0 0.0
  %295 = vmatpush1.msra.mxu0 0.0
  %296 = vmatprep.subr.mxu0 0.0
  %297 = vmatpush1.msra.mxu0 0.0
  %298 = vmatprep.subr.mxu0 0.0
  %299 = vmatpush1.msra.mxu0 0.0
  %300 = vmatprep.subr.mxu0 0.0
  %301 = vmatpush1.msra.mxu0 0.0
  %302 = vmatprep.subr.mxu0 0.0
  %303 = vmatpush1.msra.mxu0 0.0
  %304 = vmatprep.subr.mxu0 0.0
  %305 = vmatpush1.msra.mxu0 0.0
  %306 = vmatprep.subr.mxu0 0.0
  %307 = vmatpush1.msra.mxu0 0.0
  %308 = vmatprep.mubr.f32.mxu0 0.0
  %309 = vmatmul.mubr.f32.gmra.mrb[0].mxu0 %v242
  %v310 = vpop.f32.mrb[0].mxu0
  %v311 = vadd.f32 0.0, %v310
  %v312 = vpop.f32.mrb[0].mxu0
  %313 = vdwg.mxu0
  %314 = vrot.lane.b32.xlu0 %v135, 120
  %v315 = vpop.permute.xlu0 %314
  %316 = vrot.lane.b32.xlu0 %v135, 88
  %v317 = vpop.permute.xlu0 %316
  %v318 = vsel %vm146, %v315, 0
  %v320 = vsel %vm146, %v317, 0
  %322 = vmatprep.subr.mxu0 0.0
  %323 = vmatpush1.xpose.msra.mxu0 %v320
  %324 = vmatprep.subr.mxu0 0.0
  %325 = vmatpush1.xpose.msra.mxu0 0.0
  %326 = vmatprep.subr.mxu0 0.0
  %327 = vmatpush1.xpose.msra.mxu0 0.0
  %328 = vmatprep.subr.mxu0 0.0
  %329 = vmatpush1.xpose.msra.mxu0 0.0
  %330 = vmatprep.subr.mxu0 0.0
  %331 = vmatpush1.xpose.msra.mxu0 0.0
  %332 = vmatprep.subr.mxu0 0.0
  %333 = vmatpush1.xpose.msra.mxu0 0.0
  %334 = vmatprep.subr.mxu0 0.0
  %335 = vmatpush1.xpose.msra.mxu0 0.0
  %336 = vmatprep.subr.mxu0 0.0
  %337 = vmatpush1.xpose.msra.mxu0 0.0
  %338 = vmatprep.subr.mxu0 0.0
  %339 = vmatpush1.xpose.msra.mxu0 0.0
  %340 = vmatprep.subr.mxu0 0.0
  %341 = vmatpush1.xpose.msra.mxu0 0.0
  %342 = vmatprep.subr.mxu0 0.0
  %343 = vmatpush1.xpose.msra.mxu0 0.0
  %344 = vmatprep.subr.mxu0 0.0
  %345 = vmatpush1.xpose.msra.mxu0 0.0
  %346 = vmatprep.subr.mxu0 0.0
  %347 = vmatpush1.xpose.msra.mxu0 0.0
  %348 = vmatprep.subr.mxu0 0.0
  %349 = vmatpush1.xpose.msra.mxu0 0.0
  %350 = vmatprep.subr.mxu0 0.0
  %351 = vmatpush1.xpose.msra.mxu0 0.0
  %352 = vmatprep.subr.mxu0 0.0
  %353 = vmatpush1.xpose.msra.mxu0 0.0
  %354 = vmatprep.subr.mxu0 0.0
  %355 = vmatpush1.xpose.msra.mxu0 0.0
  %356 = vmatprep.subr.mxu0 0.0
  %357 = vmatpush1.xpose.msra.mxu0 0.0
  %358 = vmatprep.subr.mxu0 0.0
  %359 = vmatpush1.xpose.msra.mxu0 0.0
  %360 = vmatprep.subr.mxu0 0.0
  %361 = vmatpush1.xpose.msra.mxu0 0.0
  %362 = vmatprep.subr.mxu0 0.0
  %363 = vmatpush1.xpose.msra.mxu0 0.0
  %364 = vmatprep.subr.mxu0 0.0
  %365 = vmatpush1.xpose.msra.mxu0 0.0
  %366 = vmatprep.subr.mxu0 0.0
  %367 = vmatpush1.xpose.msra.mxu0 0.0
  %368 = vmatprep.subr.mxu0 0.0
  %369 = vmatpush1.xpose.msra.mxu0 0.0
  %370 = vmatprep.subr.mxu0 0.0
  %371 = vmatpush1.xpose.msra.mxu0 0.0
  %372 = vmatprep.subr.mxu0 0.0
  %373 = vmatpush1.xpose.msra.mxu0 0.0
  %374 = vmatprep.subr.mxu0 0.0
  %375 = vmatpush1.xpose.msra.mxu0 0.0
  %376 = vmatprep.subr.mxu0 0.0
  %377 = vmatpush1.xpose.msra.mxu0 0.0
  %378 = vmatprep.subr.mxu0 0.0
  %379 = vmatpush1.xpose.msra.mxu0 0.0
  %380 = vmatprep.subr.mxu0 0.0
  %381 = vmatpush1.xpose.msra.mxu0 0.0
  %382 = vmatprep.subr.mxu0 0.0
  %383 = vmatpush1.xpose.msra.mxu0 0.0
  %384 = vmatprep.subr.mxu0 0.0
  %385 = vmatpush1.xpose.msra.mxu0 0.0
  %386 = vmatprep.mubr.f32.mxu0 0.0
  %387 = vmatmul.mubr.f32.gmra.mrb[0].mxu0 %v318
  %v388 = vpop.f32.mrb[0].mxu0
  %v389 = vadd.f32 0.0, %v388
  %v390 = vpop.f32.mrb[0].mxu0
  %391 = vdwg.mxu0
  %v392 = vmul.f32 %v389, 0.35355338
  %v393 = vadd.f32 %v392, %v225
  %v394 = vsel %vm146, %v393, -inf
  %395 = vmax.xlane.f32.xlu0 %v394
  %v396 = vpop.xlane.xlu0 %395
  %v397 = vsub.f32 %v393, %v396
  %v398 = vmul.f32 %v397, 1.442695
  %v399 = vpow.pop %v398
  %v400 = vsel %vm146, %v399, 0.0
  %401 = vadd.xlane.f32.xlu0 %v400
  %v402 = vpop.xlane.xlu0 %401
  %v403 = vrcp.pop %v402
  %v404 = vmul.f32 %v399, %v403
  %405 = vrot.lane.b32.xlu0 %v135, 56
  %v406 = vpop.permute.xlu0 %405
  %v409 = vsel %vm146, %v404, 0
  %411 = vmatprep.subr.mxu0 0.0
  %412 = vmatpush1.msra.mxu0 %v406
  %413 = vmatprep.subr.mxu0 0.0
  %414 = vmatpush1.msra.mxu0 0.0
  %415 = vmatprep.subr.mxu0 0.0
  %416 = vmatpush1.msra.mxu0 0.0
  %417 = vmatprep.subr.mxu0 0.0
  %418 = vmatpush1.msra.mxu0 0.0
  %419 = vmatprep.subr.mxu0 0.0
  %420 = vmatpush1.msra.mxu0 0.0
  %421 = vmatprep.subr.mxu0 0.0
  %422 = vmatpush1.msra.mxu0 0.0
  %423 = vmatprep.subr.mxu0 0.0
  %424 = vmatpush1.msra.mxu0 0.0
  %425 = vmatprep.subr.mxu0 0.0
  %426 = vmatpush1.msra.mxu0 0.0
  %427 = vmatprep.subr.mxu0 0.0
  %428 = vmatpush1.msra.mxu0 0.0
  %429 = vmatprep.subr.mxu0 0.0
  %430 = vmatpush1.msra.mxu0 0.0
  %431 = vmatprep.subr.mxu0 0.0
  %432 = vmatpush1.msra.mxu0 0.0
  %433 = vmatprep.subr.mxu0 0.0
  %434 = vmatpush1.msra.mxu0 0.0
  %435 = vmatprep.subr.mxu0 0.0
  %436 = vmatpush1.msra.mxu0 0.0
  %437 = vmatprep.subr.mxu0 0.0
  %438 = vmatpush1.msra.mxu0 0.0
  %439 = vmatprep.subr.mxu0 0.0
  %440 = vmatpush1.msra.mxu0 0.0
  %441 = vmatprep.subr.mxu0 0.0
  %442 = vmatpush1.msra.mxu0 0.0
  %443 = vmatprep.subr.mxu0 0.0
  %444 = vmatpush1.msra.mxu0 0.0
  %445 = vmatprep.subr.mxu0 0.0
  %446 = vmatpush1.msra.mxu0 0.0
  %447 = vmatprep.subr.mxu0 0.0
  %448 = vmatpush1.msra.mxu0 0.0
  %449 = vmatprep.subr.mxu0 0.0
  %450 = vmatpush1.msra.mxu0 0.0
  %451 = vmatprep.subr.mxu0 0.0
  %452 = vmatpush1.msra.mxu0 0.0
  %453 = vmatprep.subr.mxu0 0.0
  %454 = vmatpush1.msra.mxu0 0.0
  %455 = vmatprep.subr.mxu0 0.0
  %456 = vmatpush1.msra.mxu0 0.0
  %457 = vmatprep.subr.mxu0 0.0
  %458 = vmatpush1.msra.mxu0 0.0
  %459 = vmatprep.subr.mxu0 0.0
  %460 = vmatpush1.msra.mxu0 0.0
  %461 = vmatprep.subr.mxu0 0.0
  %462 = vmatpush1.msra.mxu0 0.0
  %463 = vmatprep.subr.mxu0 0.0
  %464 = vmatpush1.msra.mxu0 0.0
  %465 = vmatprep.subr.mxu0 0.0
  %466 = vmatpush1.msra.mxu0 0.0
  %467 = vmatprep.subr.mxu0 0.0
  %468 = vmatpush1.msra.mxu0 0.0
  %469 = vmatprep.subr.mxu0 0.0
  %470 = vmatpush1.msra.mxu0 0.0
  %471 = vmatprep.subr.mxu0 0.0
  %472 = vmatpush1.msra.mxu0 0.0
  %473 = vmatprep.subr.mxu0 0.0
  %474 = vmatpush1.msra.mxu0 0.0
  %475 = vmatprep.mubr.f32.mxu0 0.0
  %476 = vmatmul.mubr.f32.gmra.mrb[0].mxu0 %v409
  %v477 = vpop.f32.mrb[0].mxu0
  %v478 = vadd.f32 0.0, %v477
  %v479 = vpop.f32.mrb[0].mxu0
  %480 = vdwg.mxu0
  %481 = vrot.lane.b32.xlu0 %v135, 112
  %v482 = vpop.permute.xlu0 %481
  %483 = vrot.lane.b32.xlu0 %v135, 80
  %v484 = vpop.permute.xlu0 %483
  %v485 = vsel %vm146, %v482, 0
  %v487 = vsel %vm146, %v484, 0
  %489 = vmatprep.subr.mxu0 0.0
  %490 = vmatpush1.xpose.msra.mxu0 %v487
  %491 = vmatprep.subr.mxu0 0.0
  %492 = vmatpush1.xpose.msra.mxu0 0.0
  %493 = vmatprep.subr.mxu0 0.0
  %494 = vmatpush1.xpose.msra.mxu0 0.0
  %495 = vmatprep.subr.mxu0 0.0
  %496 = vmatpush1.xpose.msra.mxu0 0.0
  %497 = vmatprep.subr.mxu0 0.0
  %498 = vmatpush1.xpose.msra.mxu0 0.0
  %499 = vmatprep.subr.mxu0 0.0
  %500 = vmatpush1.xpose.msra.mxu0 0.0
  %501 = vmatprep.subr.mxu0 0.0
  %502 = vmatpush1.xpose.msra.mxu0 0.0
  %503 = vmatprep.subr.mxu0 0.0
  %504 = vmatpush1.xpose.msra.mxu0 0.0
  %505 = vmatprep.subr.mxu0 0.0
  %506 = vmatpush1.xpose.msra.mxu0 0.0
  %507 = vmatprep.subr.mxu0 0.0
  %508 = vmatpush1.xpose.msra.mxu0 0.0
  %509 = vmatprep.subr.mxu0 0.0
  %510 = vmatpush1.xpose.msra.mxu0 0.0
  %511 = vmatprep.subr.mxu0 0.0
  %512 = vmatpush1.xpose.msra.mxu0 0.0
  %513 = vmatprep.subr.mxu0 0.0
  %514 = vmatpush1.xpose.msra.mxu0 0.0
  %515 = vmatprep.subr.mxu0 0.0
  %516 = vmatpush1.xpose.msra.mxu0 0.0
  %517 = vmatprep.subr.mxu0 0.0
  %518 = vmatpush1.xpose.msra.mxu0 0.0
  %519 = vmatprep.subr.mxu0 0.0
  %520 = vmatpush1.xpose.msra.mxu0 0.0
  %521 = vmatprep.subr.mxu0 0.0
  %522 = vmatpush1.xpose.msra.mxu0 0.0
  %523 = vmatprep.subr.mxu0 0.0
  %524 = vmatpush1.xpose.msra.mxu0 0.0
  %525 = vmatprep.subr.mxu0 0.0
  %526 = vmatpush1.xpose.msra.mxu0 0.0
  %527 = vmatprep.subr.mxu0 0.0
  %528 = vmatpush1.xpose.msra.mxu0 0.0
  %529 = vmatprep.subr.mxu0 0.0
  %530 = vmatpush1.xpose.msra.mxu0 0.0
  %531 = vmatprep.subr.mxu0 0.0
  %532 = vmatpush1.xpose.msra.mxu0 0.0
  %533 = vmatprep.subr.mxu0 0.0
  %534 = vmatpush1.xpose.msra.mxu0 0.0
  %535 = vmatprep.subr.mxu0 0.0
  %536 = vmatpush1.xpose.msra.mxu0 0.0
  %537 = vmatprep.subr.mxu0 0.0
  %538 = vmatpush1.xpose.msra.mxu0 0.0
  %539 = vmatprep.subr.mxu0 0.0
  %540 = vmatpush1.xpose.msra.mxu0 0.0
  %541 = vmatprep.subr.mxu0 0.0
  %542 = vmatpush1.xpose.msra.mxu0 0.0
  %543 = vmatprep.subr.mxu0 0.0
  %544 = vmatpush1.xpose.msra.mxu0 0.0
  %545 = vmatprep.subr.mxu0 0.0
  %546 = vmatpush1.xpose.msra.mxu0 0.0
  %547 = vmatprep.subr.mxu0 0.0
  %548 = vmatpush1.xpose.msra.mxu0 0.0
  %549 = vmatprep.subr.mxu0 0.0
  %550 = vmatpush1.xpose.msra.mxu0 0.0
  %551 = vmatprep.subr.mxu0 0.0
  %552 = vmatpush1.xpose.msra.mxu0 0.0
  %553 = vmatprep.mubr.f32.mxu0 0.0
  %554 = vmatmul.mubr.f32.gmra.mrb[0].mxu0 %v485
  %v555 = vpop.f32.mrb[0].mxu0
  %v556 = vadd.f32 0.0, %v555
  %v557 = vpop.f32.mrb[0].mxu0
  %558 = vdwg.mxu0
  %v559 = vmul.f32 %v556, 0.35355338
  %v560 = vadd.f32 %v559, %v225
  %v561 = vsel %vm146, %v560, -inf
  %562 = vmax.xlane.f32.xlu0 %v561
  %v563 = vpop.xlane.xlu0 %562
  %v564 = vsub.f32 %v560, %v563
  %v565 = vmul.f32 %v564, 1.442695
  %v566 = vpow.pop %v565
  %v567 = vsel %vm146, %v566, 0.0
  %568 = vadd.xlane.f32.xlu0 %v567
  %v569 = vpop.xlane.xlu0 %568
  %v570 = vrcp.pop %v569
  %v571 = vmul.f32 %v566, %v570
  %572 = vrot.lane.b32.xlu0 %v135, 48
  %v573 = vpop.permute.xlu0 %572
  %v576 = vsel %vm146, %v571, 0
  %578 = vmatprep.subr.mxu0 0.0
  %579 = vmatpush1.msra.mxu0 %v573
  %580 = vmatprep.subr.mxu0 0.0
  %581 = vmatpush1.msra.mxu0 0.0
  %582 = vmatprep.subr.mxu0 0.0
  %583 = vmatpush1.msra.mxu0 0.0
  %584 = vmatprep.subr.mxu0 0.0
  %585 = vmatpush1.msra.mxu0 0.0
  %586 = vmatprep.subr.mxu0 0.0
  %587 = vmatpush1.msra.mxu0 0.0
  %588 = vmatprep.subr.mxu0 0.0
  %589 = vmatpush1.msra.mxu0 0.0
  %590 = vmatprep.subr.mxu0 0.0
  %591 = vmatpush1.msra.mxu0 0.0
  %592 = vmatprep.subr.mxu0 0.0
  %593 = vmatpush1.msra.mxu0 0.0
  %594 = vmatprep.subr.mxu0 0.0
  %595 = vmatpush1.msra.mxu0 0.0
  %596 = vmatprep.subr.mxu0 0.0
  %597 = vmatpush1.msra.mxu0 0.0
  %598 = vmatprep.subr.mxu0 0.0
  %599 = vmatpush1.msra.mxu0 0.0
  %600 = vmatprep.subr.mxu0 0.0
  %601 = vmatpush1.msra.mxu0 0.0
  %602 = vmatprep.subr.mxu0 0.0
  %603 = vmatpush1.msra.mxu0 0.0
  %604 = vmatprep.subr.mxu0 0.0
  %605 = vmatpush1.msra.mxu0 0.0
  %606 = vmatprep.subr.mxu0 0.0
  %607 = vmatpush1.msra.mxu0 0.0
  %608 = vmatprep.subr.mxu0 0.0
  %609 = vmatpush1.msra.mxu0 0.0
  %610 = vmatprep.subr.mxu0 0.0
  %611 = vmatpush1.msra.mxu0 0.0
  %612 = vmatprep.subr.mxu0 0.0
  %613 = vmatpush1.msra.mxu0 0.0
  %614 = vmatprep.subr.mxu0 0.0
  %615 = vmatpush1.msra.mxu0 0.0
  %616 = vmatprep.subr.mxu0 0.0
  %617 = vmatpush1.msra.mxu0 0.0
  %618 = vmatprep.subr.mxu0 0.0
  %619 = vmatpush1.msra.mxu0 0.0
  %620 = vmatprep.subr.mxu0 0.0
  %621 = vmatpush1.msra.mxu0 0.0
  %622 = vmatprep.subr.mxu0 0.0
  %623 = vmatpush1.msra.mxu0 0.0
  %624 = vmatprep.subr.mxu0 0.0
  %625 = vmatpush1.msra.mxu0 0.0
  %626 = vmatprep.subr.mxu0 0.0
  %627 = vmatpush1.msra.mxu0 0.0
  %628 = vmatprep.subr.mxu0 0.0
  %629 = vmatpush1.msra.mxu0 0.0
  %630 = vmatprep.subr.mxu0 0.0
  %631 = vmatpush1.msra.mxu0 0.0
  %632 = vmatprep.subr.mxu0 0.0
  %633 = vmatpush1.msra.mxu0 0.0
  %634 = vmatprep.subr.mxu0 0.0
  %635 = vmatpush1.msra.mxu0 0.0
  %636 = vmatprep.subr.mxu0 0.0
  %637 = vmatpush1.msra.mxu0 0.0
  %638 = vmatprep.subr.mxu0 0.0
  %639 = vmatpush1.msra.mxu0 0.0
  %640 = vmatprep.subr.mxu0 0.0
  %641 = vmatpush1.msra.mxu0 0.0
  %642 = vmatprep.mubr.f32.mxu0 0.0
  %643 = vmatmul.mubr.f32.gmra.mrb[0].mxu0 %v576
  %v644 = vpop.f32.mrb[0].mxu0
  %v645 = vadd.f32 0.0, %v644
  %v646 = vpop.f32.mrb[0].mxu0
  %647 = vdwg.mxu0
  %648 = vrot.lane.b32.xlu0 %v135, 104
  %v649 = vpop.permute.xlu0 %648
  %650 = vrot.lane.b32.xlu0 %v135, 72
  %v651 = vpop.permute.xlu0 %650
  %v652 = vsel %vm146, %v649, 0
  %v654 = vsel %vm146, %v651, 0
  %656 = vmatprep.subr.mxu0 0.0
  %657 = vmatpush1.xpose.msra.mxu0 %v654
  %658 = vmatprep.subr.mxu0 0.0
  %659 = vmatpush1.xpose.msra.mxu0 0.0
  %660 = vmatprep.subr.mxu0 0.0
  %661 = vmatpush1.xpose.msra.mxu0 0.0
  %662 = vmatprep.subr.mxu0 0.0
  %663 = vmatpush1.xpose.msra.mxu0 0.0
  %664 = vmatprep.subr.mxu0 0.0
  %665 = vmatpush1.xpose.msra.mxu0 0.0
  %666 = vmatprep.subr.mxu0 0.0
  %667 = vmatpush1.xpose.msra.mxu0 0.0
  %668 = vmatprep.subr.mxu0 0.0
  %669 = vmatpush1.xpose.msra.mxu0 0.0
  %670 = vmatprep.subr.mxu0 0.0
  %671 = vmatpush1.xpose.msra.mxu0 0.0
  %672 = vmatprep.subr.mxu0 0.0
  %673 = vmatpush1.xpose.msra.mxu0 0.0
  %674 = vmatprep.subr.mxu0 0.0
  %675 = vmatpush1.xpose.msra.mxu0 0.0
  %676 = vmatprep.subr.mxu0 0.0
  %677 = vmatpush1.xpose.msra.mxu0 0.0
  %678 = vmatprep.subr.mxu0 0.0
  %679 = vmatpush1.xpose.msra.mxu0 0.0
  %680 = vmatprep.subr.mxu0 0.0
  %681 = vmatpush1.xpose.msra.mxu0 0.0
  %682 = vmatprep.subr.mxu0 0.0
  %683 = vmatpush1.xpose.msra.mxu0 0.0
  %684 = vmatprep.subr.mxu0 0.0
  %685 = vmatpush1.xpose.msra.mxu0 0.0
  %686 = vmatprep.subr.mxu0 0.0
  %687 = vmatpush1.xpose.msra.mxu0 0.0
  %688 = vmatprep.subr.mxu0 0.0
  %689 = vmatpush1.xpose.msra.mxu0 0.0
  %690 = vmatprep.subr.mxu0 0.0
  %691 = vmatpush1.xpose.msra.mxu0 0.0
  %692 = vmatprep.subr.mxu0 0.0
  %693 = vmatpush1.xpose.msra.mxu0 0.0
  %694 = vmatprep.subr.mxu0 0.0
  %695 = vmatpush1.xpose.msra.mxu0 0.0
  %696 = vmatprep.subr.mxu0 0.0
  %697 = vmatpush1.xpose.msra.mxu0 0.0
  %698 = vmatprep.subr.mxu0 0.0
  %699 = vmatpush1.xpose.msra.mxu0 0.0
  %700 = vmatprep.subr.mxu0 0.0
  %701 = vmatpush1.xpose.msra.mxu0 0.0
  %702 = vmatprep.subr.mxu0 0.0
  %703 = vmatpush1.xpose.msra.mxu0 0.0
  %704 = vmatprep.subr.mxu0 0.0
  %705 = vmatpush1.xpose.msra.mxu0 0.0
  %706 = vmatprep.subr.mxu0 0.0
  %707 = vmatpush1.xpose.msra.mxu0 0.0
  %708 = vmatprep.subr.mxu0 0.0
  %709 = vmatpush1.xpose.msra.mxu0 0.0
  %710 = vmatprep.subr.mxu0 0.0
  %711 = vmatpush1.xpose.msra.mxu0 0.0
  %712 = vmatprep.subr.mxu0 0.0
  %713 = vmatpush1.xpose.msra.mxu0 0.0
  %714 = vmatprep.subr.mxu0 0.0
  %715 = vmatpush1.xpose.msra.mxu0 0.0
  %716 = vmatprep.subr.mxu0 0.0
  %717 = vmatpush1.xpose.msra.mxu0 0.0
  %718 = vmatprep.subr.mxu0 0.0
  %719 = vmatpush1.xpose.msra.mxu0 0.0
  %720 = vmatprep.mubr.f32.mxu0 0.0
  %721 = vmatmul.mubr.f32.gmra.mrb[0].mxu0 %v652
  %v722 = vpop.f32.mrb[0].mxu0
  %v723 = vadd.f32 0.0, %v722
  %v724 = vpop.f32.mrb[0].mxu0
  %725 = vdwg.mxu0
  %v726 = vmul.f32 %v723, 0.35355338
  %v727 = vadd.f32 %v726, %v225
  %v728 = vsel %vm146, %v727, -inf
  %729 = vmax.xlane.f32.xlu0 %v728
  %v730 = vpop.xlane.xlu0 %729
  %v731 = vsub.f32 %v727, %v730
  %v732 = vmul.f32 %v731, 1.442695
  %v733 = vpow.pop %v732
  %v734 = vsel %vm146, %v733, 0.0
  %735 = vadd.xlane.f32.xlu0 %v734
  %v736 = vpop.xlane.xlu0 %735
  %v737 = vrcp.pop %v736
  %v738 = vmul.f32 %v733, %v737
  %739 = vrot.lane.b32.xlu0 %v135, 40
  %v740 = vpop.permute.xlu0 %739
  %v743 = vsel %vm146, %v738, 0
  %745 = vmatprep.subr.mxu0 0.0
  %746 = vmatpush1.msra.mxu0 %v740
  %747 = vmatprep.subr.mxu0 0.0
  %748 = vmatpush1.msra.mxu0 0.0
  %749 = vmatprep.subr.mxu0 0.0
  %750 = vmatpush1.msra.mxu0 0.0
  %751 = vmatprep.subr.mxu0 0.0
  %752 = vmatpush1.msra.mxu0 0.0
  %753 = vmatprep.subr.mxu0 0.0
  %754 = vmatpush1.msra.mxu0 0.0
  %755 = vmatprep.subr.mxu0 0.0
  %756 = vmatpush1.msra.mxu0 0.0
  %757 = vmatprep.subr.mxu0 0.0
  %758 = vmatpush1.msra.mxu0 0.0
  %759 = vmatprep.subr.mxu0 0.0
  %760 = vmatpush1.msra.mxu0 0.0
  %761 = vmatprep.subr.mxu0 0.0
  %762 = vmatpush1.msra.mxu0 0.0
  %763 = vmatprep.subr.mxu0 0.0
  %764 = vmatpush1.msra.mxu0 0.0
  %765 = vmatprep.subr.mxu0 0.0
  %766 = vmatpush1.msra.mxu0 0.0
  %767 = vmatprep.subr.mxu0 0.0
  %768 = vmatpush1.msra.mxu0 0.0
  %769 = vmatprep.subr.mxu0 0.0
  %770 = vmatpush1.msra.mxu0 0.0
  %771 = vmatprep.subr.mxu0 0.0
  %772 = vmatpush1.msra.mxu0 0.0
  %773 = vmatprep.subr.mxu0 0.0
  %774 = vmatpush1.msra.mxu0 0.0
  %775 = vmatprep.subr.mxu0 0.0
  %776 = vmatpush1.msra.mxu0 0.0
  %777 = vmatprep.subr.mxu0 0.0
  %778 = vmatpush1.msra.mxu0 0.0
  %779 = vmatprep.subr.mxu0 0.0
  %780 = vmatpush1.msra.mxu0 0.0
  %781 = vmatprep.subr.mxu0 0.0
  %782 = vmatpush1.msra.mxu0 0.0
  %783 = vmatprep.subr.mxu0 0.0
  %784 = vmatpush1.msra.mxu0 0.0
  %785 = vmatprep.subr.mxu0 0.0
  %786 = vmatpush1.msra.mxu0 0.0
  %787 = vmatprep.subr.mxu0 0.0
  %788 = vmatpush1.msra.mxu0 0.0
  %789 = vmatprep.subr.mxu0 0.0
  %790 = vmatpush1.msra.mxu0 0.0
  %791 = vmatprep.subr.mxu0 0.0
  %792 = vmatpush1.msra.mxu0 0.0
  %793 = vmatprep.subr.mxu0 0.0
  %794 = vmatpush1.msra.mxu0 0.0
  %795 = vmatprep.subr.mxu0 0.0
  %796 = vmatpush1.msra.mxu0 0.0
  %797 = vmatprep.subr.mxu0 0.0
  %798 = vmatpush1.msra.mxu0 0.0
  %799 = vmatprep.subr.mxu0 0.0
  %800 = vmatpush1.msra.mxu0 0.0
  %801 = vmatprep.subr.mxu0 0.0
  %802 = vmatpush1.msra.mxu0 0.0
  %803 = vmatprep.subr.mxu0 0.0
  %804 = vmatpush1.msra.mxu0 0.0
  %805 = vmatprep.subr.mxu0 0.0
  %806 = vmatpush1.msra.mxu0 0.0
  %807 = vmatprep.subr.mxu0 0.0
  %808 = vmatpush1.msra.mxu0 0.0
  %809 = vmatprep.mubr.f32.mxu0 0.0
  %810 = vmatmul.mubr.f32.gmra.mrb[0].mxu0 %v743
  %v811 = vpop.f32.mrb[0].mxu0
  %v812 = vadd.f32 0.0, %v811
  %v813 = vpop.f32.mrb[0].mxu0
  %814 = vdwg.mxu0
  %816 = vrot.lane.b32.xlu0 %v478, 8
  %v817 = vpop.permute.xlu0 %816
  %820 = vrot.lane.b32.xlu0 %v645, 16
  %v821 = vpop.permute.xlu0 %820
  %824 = vrot.lane.b32.xlu0 %v812, 24
  %v825 = vpop.permute.xlu0 %824
  %v827 = vsel %vm146, %v311, %v817
  %vm828 = vcmask 130048
  %v829 = vsel %vm828, %v827, %v821
  %vm830 = vcmask 195584
  %v831 = vsel %vm830, %v829, %v825
  %833 = vrot.lane.b32.xlu0 %v140, 96
  %v834 = vpop.permute.xlu0 %833
  %v835 = vsel %vm146, %v140, 0
  %v837 = vsel %vm146, %v834, 0
  %839 = vmatprep.subr.mxu0 0.0
  %840 = vmatpush1.xpose.msra.mxu0 %v837
  %841 = vmatprep.subr.mxu0 0.0
  %842 = vmatpush1.xpose.msra.mxu0 0.0
  %843 = vmatprep.subr.mxu0 0.0
  %844 = vmatpush1.xpose.msra.mxu0 0.0
  %845 = vmatprep.subr.mxu0 0.0
  %846 = vmatpush1.xpose.msra.mxu0 0.0
  %847 = vmatprep.subr.mxu0 0.0
  %848 = vmatpush1.xpose.msra.mxu0 0.0
  %849 = vmatprep.subr.mxu0 0.0
  %850 = vmatpush1.xpose.msra.mxu0 0.0
  %851 = vmatprep.subr.mxu0 0.0
  %852 = vmatpush1.xpose.msra.mxu0 0.0
  %853 = vmatprep.subr.mxu0 0.0
  %854 = vmatpush1.xpose.msra.mxu0 0.0
  %855 = vmatprep.subr.mxu0 0.0
  %856 = vmatpush1.xpose.msra.mxu0 0.0
  %857 = vmatprep.subr.mxu0 0.0
  %858 = vmatpush1.xpose.msra.mxu0 0.0
  %859 = vmatprep.subr.mxu0 0.0
  %860 = vmatpush1.xpose.msra.mxu0 0.0
  %861 = vmatprep.subr.mxu0 0.0
  %862 = vmatpush1.xpose.msra.mxu0 0.0
  %863 = vmatprep.subr.mxu0 0.0
  %864 = vmatpush1.xpose.msra.mxu0 0.0
  %865 = vmatprep.subr.mxu0 0.0
  %866 = vmatpush1.xpose.msra.mxu0 0.0
  %867 = vmatprep.subr.mxu0 0.0
  %868 = vmatpush1.xpose.msra.mxu0 0.0
  %869 = vmatprep.subr.mxu0 0.0
  %870 = vmatpush1.xpose.msra.mxu0 0.0
  %871 = vmatprep.subr.mxu0 0.0
  %872 = vmatpush1.xpose.msra.mxu0 0.0
  %873 = vmatprep.subr.mxu0 0.0
  %874 = vmatpush1.xpose.msra.mxu0 0.0
  %875 = vmatprep.subr.mxu0 0.0
  %876 = vmatpush1.xpose.msra.mxu0 0.0
  %877 = vmatprep.subr.mxu0 0.0
  %878 = vmatpush1.xpose.msra.mxu0 0.0
  %879 = vmatprep.subr.mxu0 0.0
  %880 = vmatpush1.xpose.msra.mxu0 0.0
  %881 = vmatprep.subr.mxu0 0.0
  %882 = vmatpush1.xpose.msra.mxu0 0.0
  %883 = vmatprep.subr.mxu0 0.0
  %884 = vmatpush1.xpose.msra.mxu0 0.0
  %885 = vmatprep.subr.mxu0 0.0
  %886 = vmatpush1.xpose.msra.mxu0 0.0
  %887 = vmatprep.subr.mxu0 0.0
  %888 = vmatpush1.xpose.msra.mxu0 0.0
  %889 = vmatprep.subr.mxu0 0.0
  %890 = vmatpush1.xpose.msra.mxu0 0.0
  %891 = vmatprep.subr.mxu0 0.0
  %892 = vmatpush1.xpose.msra.mxu0 0.0
  %893 = vmatprep.subr.mxu0 0.0
  %894 = vmatpush1.xpose.msra.mxu0 0.0
  %895 = vmatprep.subr.mxu0 0.0
  %896 = vmatpush1.xpose.msra.mxu0 0.0
  %897 = vmatprep.subr.mxu0 0.0
  %898 = vmatpush1.xpose.msra.mxu0 0.0
  %899 = vmatprep.subr.mxu0 0.0
  %900 = vmatpush1.xpose.msra.mxu0 0.0
  %901 = vmatprep.subr.mxu0 0.0
  %902 = vmatpush1.xpose.msra.mxu0 0.0
  %903 = vmatprep.mubr.f32.mxu0 0.0
  %904 = vmatmul.mubr.f32.gmra.mrb[0].mxu0 %v835
  %v905 = vpop.f32.mrb[0].mxu0
  %v906 = vadd.f32 0.0, %v905
  %v907 = vpop.f32.mrb[0].mxu0
  %908 = vdwg.mxu0
  %v909 = vmul.f32 %v906, 0.35355338
  %v910 = vlaneseq
  %v911 = vshrl.u32 %v910, 7
  %v912 = vsub.s32 1, %v911
  %v913 = vrot.slane %v49, %v912
  %v914 = vadd.f32 %v909, %v913
  %v915 = vsel %vm146, %v914, -inf
  %916 = vmax.xlane.f32.xlu0 %v915
  %v917 = vpop.xlane.xlu0 %916
  %v918 = vsub.f32 %v914, %v917
  %v919 = vmul.f32 %v918, 1.442695
  %v920 = vpow.pop %v919
  %v921 = vsel %vm146, %v920, 0.0
  %922 = vadd.xlane.f32.xlu0 %v921
  %v923 = vpop.xlane.xlu0 %922
  %v924 = vrcp.pop %v923
  %v925 = vmul.f32 %v920, %v924
  %926 = vrot.lane.b32.xlu0 %v140, 64
  %v927 = vpop.permute.xlu0 %926
  %v930 = vsel %vm146, %v925, 0
  %932 = vmatprep.subr.mxu0 0.0
  %933 = vmatpush1.msra.mxu0 %v927
  %934 = vmatprep.subr.mxu0 0.0
  %935 = vmatpush1.msra.mxu0 0.0
  %936 = vmatprep.subr.mxu0 0.0
  %937 = vmatpush1.msra.mxu0 0.0
  %938 = vmatprep.subr.mxu0 0.0
  %939 = vmatpush1.msra.mxu0 0.0
  %940 = vmatprep.subr.mxu0 0.0
  %941 = vmatpush1.msra.mxu0 0.0
  %942 = vmatprep.subr.mxu0 0.0
  %943 = vmatpush1.msra.mxu0 0.0
  %944 = vmatprep.subr.mxu0 0.0
  %945 = vmatpush1.msra.mxu0 0.0
  %946 = vmatprep.subr.mxu0 0.0
  %947 = vmatpush1.msra.mxu0 0.0
  %948 = vmatprep.subr.mxu0 0.0
  %949 = vmatpush1.msra.mxu0 0.0
  %950 = vmatprep.subr.mxu0 0.0
  %951 = vmatpush1.msra.mxu0 0.0
  %952 = vmatprep.subr.mxu0 0.0
  %953 = vmatpush1.msra.mxu0 0.0
  %954 = vmatprep.subr.mxu0 0.0
  %955 = vmatpush1.msra.mxu0 0.0
  %956 = vmatprep.subr.mxu0 0.0
  %957 = vmatpush1.msra.mxu0 0.0
  %958 = vmatprep.subr.mxu0 0.0
  %959 = vmatpush1.msra.mxu0 0.0
  %960 = vmatprep.subr.mxu0 0.0
  %961 = vmatpush1.msra.mxu0 0.0
  %962 = vmatprep.subr.mxu0 0.0
  %963 = vmatpush1.msra.mxu0 0.0
  %964 = vmatprep.subr.mxu0 0.0
  %965 = vmatpush1.msra.mxu0 0.0
  %966 = vmatprep.subr.mxu0 0.0
  %967 = vmatpush1.msra.mxu0 0.0
  %968 = vmatprep.subr.mxu0 0.0
  %969 = vmatpush1.msra.mxu0 0.0
  %970 = vmatprep.subr.mxu0 0.0
  %971 = vmatpush1.msra.mxu0 0.0
  %972 = vmatprep.subr.mxu0 0.0
  %973 = vmatpush1.msra.mxu0 0.0
  %974 = vmatprep.subr.mxu0 0.0
  %975 = vmatpush1.msra.mxu0 0.0
  %976 = vmatprep.subr.mxu0 0.0
  %977 = vmatpush1.msra.mxu0 0.0
  %978 = vmatprep.subr.mxu0 0.0
  %979 = vmatpush1.msra.mxu0 0.0
  %980 = vmatprep.subr.mxu0 0.0
  %981 = vmatpush1.msra.mxu0 0.0
  %982 = vmatprep.subr.mxu0 0.0
  %983 = vmatpush1.msra.mxu0 0.0
  %984 = vmatprep.subr.mxu0 0.0
  %985 = vmatpush1.msra.mxu0 0.0
  %986 = vmatprep.subr.mxu0 0.0
  %987 = vmatpush1.msra.mxu0 0.0
  %988 = vmatprep.subr.mxu0 0.0
  %989 = vmatpush1.msra.mxu0 0.0
  %990 = vmatprep.subr.mxu0 0.0
  %991 = vmatpush1.msra.mxu0 0.0
  %992 = vmatprep.subr.mxu0 0.0
  %993 = vmatpush1.msra.mxu0 0.0
  %994 = vmatprep.subr.mxu0 0.0
  %995 = vmatpush1.msra.mxu0 0.0
  %996 = vmatprep.mubr.f32.mxu0 0.0
  %997 = vmatmul.mubr.f32.gmra.mrb[0].mxu0 %v930
  %v998 = vpop.f32.mrb[0].mxu0
  %v999 = vadd.f32 0.0, %v998
  %v1000 = vpop.f32.mrb[0].mxu0
  %1001 = vdwg.mxu0
  %1002 = vrot.lane.b32.xlu0 %v140, 120
  %v1003 = vpop.permute.xlu0 %1002
  %1004 = vrot.lane.b32.xlu0 %v140, 88
  %v1005 = vpop.permute.xlu0 %1004
  %v1006 = vsel %vm146, %v1003, 0
  %v1008 = vsel %vm146, %v1005, 0
  %1010 = vmatprep.subr.mxu0 0.0
  %1011 = vmatpush1.xpose.msra.mxu0 %v1008
  %1012 = vmatprep.subr.mxu0 0.0
  %1013 = vmatpush1.xpose.msra.mxu0 0.0
  %1014 = vmatprep.subr.mxu0 0.0
  %1015 = vmatpush1.xpose.msra.mxu0 0.0
  %1016 = vmatprep.subr.mxu0 0.0
  %1017 = vmatpush1.xpose.msra.mxu0 0.0
  %1018 = vmatprep.subr.mxu0 0.0
  %1019 = vmatpush1.xpose.msra.mxu0 0.0
  %1020 = vmatprep.subr.mxu0 0.0
  %1021 = vmatpush1.xpose.msra.mxu0 0.0
  %1022 = vmatprep.subr.mxu0 0.0
  %1023 = vmatpush1.xpose.msra.mxu0 0.0
  %1024 = vmatprep.subr.mxu0 0.0
  %1025 = vmatpush1.xpose.msra.mxu0 0.0
  %1026 = vmatprep.subr.mxu0 0.0
  %1027 = vmatpush1.xpose.msra.mxu0 0.0
  %1028 = vmatprep.subr.mxu0 0.0
  %1029 = vmatpush1.xpose.msra.mxu0 0.0
  %1030 = vmatprep.subr.mxu0 0.0
  %1031 = vmatpush1.xpose.msra.mxu0 0.0
  %1032 = vmatprep.subr.mxu0 0.0
  %1033 = vmatpush1.xpose.msra.mxu0 0.0
  %1034 = vmatprep.subr.mxu0 0.0
  %1035 = vmatpush1.xpose.msra.mxu0 0.0
  %1036 = vmatprep.subr.mxu0 0.0
  %1037 = vmatpush1.xpose.msra.mxu0 0.0
  %1038 = vmatprep.subr.mxu0 0.0
  %1039 = vmatpush1.xpose.msra.mxu0 0.0
  %1040 = vmatprep.subr.mxu0 0.0
  %1041 = vmatpush1.xpose.msra.mxu0 0.0
  %1042 = vmatprep.subr.mxu0 0.0
  %1043 = vmatpush1.xpose.msra.mxu0 0.0
  %1044 = vmatprep.subr.mxu0 0.0
  %1045 = vmatpush1.xpose.msra.mxu0 0.0
  %1046 = vmatprep.subr.mxu0 0.0
  %1047 = vmatpush1.xpose.msra.mxu0 0.0
  %1048 = vmatprep.subr.mxu0 0.0
  %1049 = vmatpush1.xpose.msra.mxu0 0.0
  %1050 = vmatprep.subr.mxu0 0.0
  %1051 = vmatpush1.xpose.msra.mxu0 0.0
  %1052 = vmatprep.subr.mxu0 0.0
  %1053 = vmatpush1.xpose.msra.mxu0 0.0
  %1054 = vmatprep.subr.mxu0 0.0
  %1055 = vmatpush1.xpose.msra.mxu0 0.0
  %1056 = vmatprep.subr.mxu0 0.0
  %1057 = vmatpush1.xpose.msra.mxu0 0.0
  %1058 = vmatprep.subr.mxu0 0.0
  %1059 = vmatpush1.xpose.msra.mxu0 0.0
  %1060 = vmatprep.subr.mxu0 0.0
  %1061 = vmatpush1.xpose.msra.mxu0 0.0
  %1062 = vmatprep.subr.mxu0 0.0
  %1063 = vmatpush1.xpose.msra.mxu0 0.0
  %1064 = vmatprep.subr.mxu0 0.0
  %1065 = vmatpush1.xpose.msra.mxu0 0.0
  %1066 = vmatprep.subr.mxu0 0.0
  %1067 = vmatpush1.xpose.msra.mxu0 0.0
  %1068 = vmatprep.subr.mxu0 0.0
  %1069 = vmatpush1.xpose.msra.mxu0 0.0
  %1070 = vmatprep.subr.mxu0 0.0
  %1071 = vmatpush1.xpose.msra.mxu0 0.0
  %1072 = vmatprep.subr.mxu0 0.0
  %1073 = vmatpush1.xpose.msra.mxu0 0.0
  %1074 = vmatprep.mubr.f32.mxu0 0.0
  %1075 = vmatmul.mubr.f32.gmra.mrb[0].mxu0 %v1006
  %v1076 = vpop.f32.mrb[0].mxu0
  %v1077 = vadd.f32 0.0, %v1076
  %v1078 = vpop.f32.mrb[0].mxu0
  %1079 = vdwg.mxu0
  %v1080 = vmul.f32 %v1077, 0.35355338
  %v1081 = vadd.f32 %v1080, %v913
  %v1082 = vsel %vm146, %v1081, -inf
  %1083 = vmax.xlane.f32.xlu0 %v1082
  %v1084 = vpop.xlane.xlu0 %1083
  %v1085 = vsub.f32 %v1081, %v1084
  %v1086 = vmul.f32 %v1085, 1.442695
  %v1087 = vpow.pop %v1086
  %v1088 = vsel %vm146, %v1087, 0.0
  %1089 = vadd.xlane.f32.xlu0 %v1088
  %v1090 = vpop.xlane.xlu0 %1089
  %v1091 = vrcp.pop %v1090
  %v1092 = vmul.f32 %v1087, %v1091
  %1093 = vrot.lane.b32.xlu0 %v140, 56
  %v1094 = vpop.permute.xlu0 %1093
  %v1097 = vsel %vm146, %v1092, 0
  %1099 = vmatprep.subr.mxu0 0.0
  %1100 = vmatpush1.msra.mxu0 %v1094
  %1101 = vmatprep.subr.mxu0 0.0
  %1102 = vmatpush1.msra.mxu0 0.0
  %1103 = vmatprep.subr.mxu0 0.0
  %1104 = vmatpush1.msra.mxu0 0.0
  %1105 = vmatprep.subr.mxu0 0.0
  %1106 = vmatpush1.msra.mxu0 0.0
  %1107 = vmatprep.subr.mxu0 0.0
  %1108 = vmatpush1.msra.mxu0 0.0
  %1109 = vmatprep.subr.mxu0 0.0
  %1110 = vmatpush1.msra.mxu0 0.0
  %1111 = vmatprep.subr.mxu0 0.0
  %1112 = vmatpush1.msra.mxu0 0.0
  %1113 = vmatprep.subr.mxu0 0.0
  %1114 = vmatpush1.msra.mxu0 0.0
  %1115 = vmatprep.subr.mxu0 0.0
  %1116 = vmatpush1.msra.mxu0 0.0
  %1117 = vmatprep.subr.mxu0 0.0
  %1118 = vmatpush1.msra.mxu0 0.0
  %1119 = vmatprep.subr.mxu0 0.0
  %1120 = vmatpush1.msra.mxu0 0.0
  %1121 = vmatprep.subr.mxu0 0.0
  %1122 = vmatpush1.msra.mxu0 0.0
  %1123 = vmatprep.subr.mxu0 0.0
  %1124 = vmatpush1.msra.mxu0 0.0
  %1125 = vmatprep.subr.mxu0 0.0
  %1126 = vmatpush1.msra.mxu0 0.0
  %1127 = vmatprep.subr.mxu0 0.0
  %1128 = vmatpush1.msra.mxu0 0.0
  %1129 = vmatprep.subr.mxu0 0.0
  %1130 = vmatpush1.msra.mxu0 0.0
  %1131 = vmatprep.subr.mxu0 0.0
  %1132 = vmatpush1.msra.mxu0 0.0
  %1133 = vmatprep.subr.mxu0 0.0
  %1134 = vmatpush1.msra.mxu0 0.0
  %1135 = vmatprep.subr.mxu0 0.0
  %1136 = vmatpush1.msra.mxu0 0.0
  %1137 = vmatprep.subr.mxu0 0.0
  %1138 = vmatpush1.msra.mxu0 0.0
  %1139 = vmatprep.subr.mxu0 0.0
  %1140 = vmatpush1.msra.mxu0 0.0
  %1141 = vmatprep.subr.mxu0 0.0
  %1142 = vmatpush1.msra.mxu0 0.0
  %1143 = vmatprep.subr.mxu0 0.0
  %1144 = vmatpush1.msra.mxu0 0.0
  %1145 = vmatprep.subr.mxu0 0.0
  %1146 = vmatpush1.msra.mxu0 0.0
  %1147 = vmatprep.subr.mxu0 0.0
  %1148 = vmatpush1.msra.mxu0 0.0
  %1149 = vmatprep.subr.mxu0 0.0
  %1150 = vmatpush1.msra.mxu0 0.0
  %1151 = vmatprep.subr.mxu0 0.0
  %1152 = vmatpush1.msra.mxu0 0.0
  %1153 = vmatprep.subr.mxu0 0.0
  %1154 = vmatpush1.msra.mxu0 0.0
  %1155 = vmatprep.subr.mxu0 0.0
  %1156 = vmatpush1.msra.mxu0 0.0
  %1157 = vmatprep.subr.mxu0 0.0
  %1158 = vmatpush1.msra.mxu0 0.0
  %1159 = vmatprep.subr.mxu0 0.0
  %1160 = vmatpush1.msra.mxu0 0.0
  %1161 = vmatprep.subr.mxu0 0.0
  %1162 = vmatpush1.msra.mxu0 0.0
  %1163 = vmatprep.mubr.f32.mxu0 0.0
  %1164 = vmatmul.mubr.f32.gmra.mrb[0].mxu0 %v1097
  %v1165 = vpop.f32.mrb[0].mxu0
  %v1166 = vadd.f32 0.0, %v1165
  %v1167 = vpop.f32.mrb[0].mxu0
  %1168 = vdwg.mxu0
  %1169 = vrot.lane.b32.xlu0 %v140, 112
  %v1170 = vpop.permute.xlu0 %1169
  %1171 = vrot.lane.b32.xlu0 %v140, 80
  %v1172 = vpop.permute.xlu0 %1171
  %v1173 = vsel %vm146, %v1170, 0
  %v1175 = vsel %vm146, %v1172, 0
  %1177 = vmatprep.subr.mxu0 0.0
  %1178 = vmatpush1.xpose.msra.mxu0 %v1175
  %1179 = vmatprep.subr.mxu0 0.0
  %1180 = vmatpush1.xpose.msra.mxu0 0.0
  %1181 = vmatprep.subr.mxu0 0.0
  %1182 = vmatpush1.xpose.msra.mxu0 0.0
  %1183 = vmatprep.subr.mxu0 0.0
  %1184 = vmatpush1.xpose.msra.mxu0 0.0
  %1185 = vmatprep.subr.mxu0 0.0
  %1186 = vmatpush1.xpose.msra.mxu0 0.0
  %1187 = vmatprep.subr.mxu0 0.0
  %1188 = vmatpush1.xpose.msra.mxu0 0.0
  %1189 = vmatprep.subr.mxu0 0.0
  %1190 = vmatpush1.xpose.msra.mxu0 0.0
  %1191 = vmatprep.subr.mxu0 0.0
  %1192 = vmatpush1.xpose.msra.mxu0 0.0
  %1193 = vmatprep.subr.mxu0 0.0
  %1194 = vmatpush1.xpose.msra.mxu0 0.0
  %1195 = vmatprep.subr.mxu0 0.0
  %1196 = vmatpush1.xpose.msra.mxu0 0.0
  %1197 = vmatprep.subr.mxu0 0.0
  %1198 = vmatpush1.xpose.msra.mxu0 0.0
  %1199 = vmatprep.subr.mxu0 0.0
  %1200 = vmatpush1.xpose.msra.mxu0 0.0
  %1201 = vmatprep.subr.mxu0 0.0
  %1202 = vmatpush1.xpose.msra.mxu0 0.0
  %1203 = vmatprep.subr.mxu0 0.0
  %1204 = vmatpush1.xpose.msra.mxu0 0.0
  %1205 = vmatprep.subr.mxu0 0.0
  %1206 = vmatpush1.xpose.msra.mxu0 0.0
  %1207 = vmatprep.subr.mxu0 0.0
  %1208 = vmatpush1.xpose.msra.mxu0 0.0
  %1209 = vmatprep.subr.mxu0 0.0
  %1210 = vmatpush1.xpose.msra.mxu0 0.0
  %1211 = vmatprep.subr.mxu0 0.0
  %1212 = vmatpush1.xpose.msra.mxu0 0.0
  %1213 = vmatprep.subr.mxu0 0.0
  %1214 = vmatpush1.xpose.msra.mxu0 0.0
  %1215 = vmatprep.subr.mxu0 0.0
  %1216 = vmatpush1.xpose.msra.mxu0 0.0
  %1217 = vmatprep.subr.mxu0 0.0
  %1218 = vmatpush1.xpose.msra.mxu0 0.0
  %1219 = vmatprep.subr.mxu0 0.0
  %1220 = vmatpush1.xpose.msra.mxu0 0.0
  %1221 = vmatprep.subr.mxu0 0.0
  %1222 = vmatpush1.xpose.msra.mxu0 0.0
  %1223 = vmatprep.subr.mxu0 0.0
  %1224 = vmatpush1.xpose.msra.mxu0 0.0
  %1225 = vmatprep.subr.mxu0 0.0
  %1226 = vmatpush1.xpose.msra.mxu0 0.0
  %1227 = vmatprep.subr.mxu0 0.0
  %1228 = vmatpush1.xpose.msra.mxu0 0.0
  %1229 = vmatprep.subr.mxu0 0.0
  %1230 = vmatpush1.xpose.msra.mxu0 0.0
  %1231 = vmatprep.subr.mxu0 0.0
  %1232 = vmatpush1.xpose.msra.mxu0 0.0
  %1233 = vmatprep.subr.mxu0 0.0
  %1234 = vmatpush1.xpose.msra.mxu0 0.0
  %1235 = vmatprep.subr.mxu0 0.0
  %1236 = vmatpush1.xpose.msra.mxu0 0.0
  %1237 = vmatprep.subr.mxu0 0.0
  %1238 = vmatpush1.xpose.msra.mxu0 0.0
  %1239 = vmatprep.subr.mxu0 0.0
  %1240 = vmatpush1.xpose.msra.mxu0 0.0
  %1241 = vmatprep.mubr.f32.mxu0 0.0
  %1242 = vmatmul.mubr.f32.gmra.mrb[0].mxu0 %v1173
  %v1243 = vpop.f32.mrb[0].mxu0
  %v1244 = vadd.f32 0.0, %v1243
  %v1245 = vpop.f32.mrb[0].mxu0
  %1246 = vdwg.mxu0
  %v1247 = vmul.f32 %v1244, 0.35355338
  %v1248 = vadd.f32 %v1247, %v913
  %v1249 = vsel %vm146, %v1248, -inf
  %1250 = vmax.xlane.f32.xlu0 %v1249
  %v1251 = vpop.xlane.xlu0 %1250
  %v1252 = vsub.f32 %v1248, %v1251
  %v1253 = vmul.f32 %v1252, 1.442695
  %v1254 = vpow.pop %v1253
  %v1255 = vsel %vm146, %v1254, 0.0
  %1256 = vadd.xlane.f32.xlu0 %v1255
  %v1257 = vpop.xlane.xlu0 %1256
  %v1258 = vrcp.pop %v1257
  %v1259 = vmul.f32 %v1254, %v1258
  %1260 = vrot.lane.b32.xlu0 %v140, 48
  %v1261 = vpop.permute.xlu0 %1260
  %v1264 = vsel %vm146, %v1259, 0
  %1266 = vmatprep.subr.mxu0 0.0
  %1267 = vmatpush1.msra.mxu0 %v1261
  %1268 = vmatprep.subr.mxu0 0.0
  %1269 = vmatpush1.msra.mxu0 0.0
  %1270 = vmatprep.subr.mxu0 0.0
  %1271 = vmatpush1.msra.mxu0 0.0
  %1272 = vmatprep.subr.mxu0 0.0
  %1273 = vmatpush1.msra.mxu0 0.0
  %1274 = vmatprep.subr.mxu0 0.0
  %1275 = vmatpush1.msra.mxu0 0.0
  %1276 = vmatprep.subr.mxu0 0.0
  %1277 = vmatpush1.msra.mxu0 0.0
  %1278 = vmatprep.subr.mxu0 0.0
  %1279 = vmatpush1.msra.mxu0 0.0
  %1280 = vmatprep.subr.mxu0 0.0
  %1281 = vmatpush1.msra.mxu0 0.0
  %1282 = vmatprep.subr.mxu0 0.0
  %1283 = vmatpush1.msra.mxu0 0.0
  %1284 = vmatprep.subr.mxu0 0.0
  %1285 = vmatpush1.msra.mxu0 0.0
  %1286 = vmatprep.subr.mxu0 0.0
  %1287 = vmatpush1.msra.mxu0 0.0
  %1288 = vmatprep.subr.mxu0 0.0
  %1289 = vmatpush1.msra.mxu0 0.0
  %1290 = vmatprep.subr.mxu0 0.0
  %1291 = vmatpush1.msra.mxu0 0.0
  %1292 = vmatprep.subr.mxu0 0.0
  %1293 = vmatpush1.msra.mxu0 0.0
  %1294 = vmatprep.subr.mxu0 0.0
  %1295 = vmatpush1.msra.mxu0 0.0
  %1296 = vmatprep.subr.mxu0 0.0
  %1297 = vmatpush1.msra.mxu0 0.0
  %1298 = vmatprep.subr.mxu0 0.0
  %1299 = vmatpush1.msra.mxu0 0.0
  %1300 = vmatprep.subr.mxu0 0.0
  %1301 = vmatpush1.msra.mxu0 0.0
  %1302 = vmatprep.subr.mxu0 0.0
  %1303 = vmatpush1.msra.mxu0 0.0
  %1304 = vmatprep.subr.mxu0 0.0
  %1305 = vmatpush1.msra.mxu0 0.0
  %1306 = vmatprep.subr.mxu0 0.0
  %1307 = vmatpush1.msra.mxu0 0.0
  %1308 = vmatprep.subr.mxu0 0.0
  %1309 = vmatpush1.msra.mxu0 0.0
  %1310 = vmatprep.subr.mxu0 0.0
  %1311 = vmatpush1.msra.mxu0 0.0
  %1312 = vmatprep.subr.mxu0 0.0
  %1313 = vmatpush1.msra.mxu0 0.0
  %1314 = vmatprep.subr.mxu0 0.0
  %1315 = vmatpush1.msra.mxu0 0.0
  %1316 = vmatprep.subr.mxu0 0.0
  %1317 = vmatpush1.msra.mxu0 0.0
  %1318 = vmatprep.subr.mxu0 0.0
  %1319 = vmatpush1.msra.mxu0 0.0
  %1320 = vmatprep.subr.mxu0 0.0
  %1321 = vmatpush1.msra.mxu0 0.0
  %1322 = vmatprep.subr.mxu0 0.0
  %1323 = vmatpush1.msra.mxu0 0.0
  %1324 = vmatprep.subr.mxu0 0.0
  %1325 = vmatpush1.msra.mxu0 0.0
  %1326 = vmatprep.subr.mxu0 0.0
  %1327 = vmatpush1.msra.mxu0 0.0
  %1328 = vmatprep.subr.mxu0 0.0
  %1329 = vmatpush1.msra.mxu0 0.0
  %1330 = vmatprep.mubr.f32.mxu0 0.0
  %1331 = vmatmul.mubr.f32.gmra.mrb[0].mxu0 %v1264
  %v1332 = vpop.f32.mrb[0].mxu0
  %v1333 = vadd.f32 0.0, %v1332
  %v1334 = vpop.f32.mrb[0].mxu0
  %1335 = vdwg.mxu0
  %1336 = vrot.lane.b32.xlu0 %v140, 104
  %v1337 = vpop.permute.xlu0 %1336
  %1338 = vrot.lane.b32.xlu0 %v140, 72
  %v1339 = vpop.permute.xlu0 %1338
  %v1340 = vsel %vm146, %v1337, 0
  %v1342 = vsel %vm146, %v1339, 0
  %1344 = vmatprep.subr.mxu0 0.0
  %1345 = vmatpush1.xpose.msra.mxu0 %v1342
  %1346 = vmatprep.subr.mxu0 0.0
  %1347 = vmatpush1.xpose.msra.mxu0 0.0
  %1348 = vmatprep.subr.mxu0 0.0
  %1349 = vmatpush1.xpose.msra.mxu0 0.0
  %1350 = vmatprep.subr.mxu0 0.0
  %1351 = vmatpush1.xpose.msra.mxu0 0.0
  %1352 = vmatprep.subr.mxu0 0.0
  %1353 = vmatpush1.xpose.msra.mxu0 0.0
  %1354 = vmatprep.subr.mxu0 0.0
  %1355 = vmatpush1.xpose.msra.mxu0 0.0
  %1356 = vmatprep.subr.mxu0 0.0
  %1357 = vmatpush1.xpose.msra.mxu0 0.0
  %1358 = vmatprep.subr.mxu0 0.0
  %1359 = vmatpush1.xpose.msra.mxu0 0.0
  %1360 = vmatprep.subr.mxu0 0.0
  %1361 = vmatpush1.xpose.msra.mxu0 0.0
  %1362 = vmatprep.subr.mxu0 0.0
  %1363 = vmatpush1.xpose.msra.mxu0 0.0
  %1364 = vmatprep.subr.mxu0 0.0
  %1365 = vmatpush1.xpose.msra.mxu0 0.0
  %1366 = vmatprep.subr.mxu0 0.0
  %1367 = vmatpush1.xpose.msra.mxu0 0.0
  %1368 = vmatprep.subr.mxu0 0.0
  %1369 = vmatpush1.xpose.msra.mxu0 0.0
  %1370 = vmatprep.subr.mxu0 0.0
  %1371 = vmatpush1.xpose.msra.mxu0 0.0
  %1372 = vmatprep.subr.mxu0 0.0
  %1373 = vmatpush1.xpose.msra.mxu0 0.0
  %1374 = vmatprep.subr.mxu0 0.0
  %1375 = vmatpush1.xpose.msra.mxu0 0.0
  %1376 = vmatprep.subr.mxu0 0.0
  %1377 = vmatpush1.xpose.msra.mxu0 0.0
  %1378 = vmatprep.subr.mxu0 0.0
  %1379 = vmatpush1.xpose.msra.mxu0 0.0
  %1380 = vmatprep.subr.mxu0 0.0
  %1381 = vmatpush1.xpose.msra.mxu0 0.0
  %1382 = vmatprep.subr.mxu0 0.0
  %1383 = vmatpush1.xpose.msra.mxu0 0.0
  %1384 = vmatprep.subr.mxu0 0.0
  %1385 = vmatpush1.xpose.msra.mxu0 0.0
  %1386 = vmatprep.subr.mxu0 0.0
  %1387 = vmatpush1.xpose.msra.mxu0 0.0
  %1388 = vmatprep.subr.mxu0 0.0
  %1389 = vmatpush1.xpose.msra.mxu0 0.0
  %1390 = vmatprep.subr.mxu0 0.0
  %1391 = vmatpush1.xpose.msra.mxu0 0.0
  %1392 = vmatprep.subr.mxu0 0.0
  %1393 = vmatpush1.xpose.msra.mxu0 0.0
  %1394 = vmatprep.subr.mxu0 0.0
  %1395 = vmatpush1.xpose.msra.mxu0 0.0
  %1396 = vmatprep.subr.mxu0 0.0
  %1397 = vmatpush1.xpose.msra.mxu0 0.0
  %1398 = vmatprep.subr.mxu0 0.0
  %1399 = vmatpush1.xpose.msra.mxu0 0.0
  %1400 = vmatprep.subr.mxu0 0.0
  %1401 = vmatpush1.xpose.msra.mxu0 0.0
  %1402 = vmatprep.subr.mxu0 0.0
  %1403 = vmatpush1.xpose.msra.mxu0 0.0
  %1404 = vmatprep.subr.mxu0 0.0
  %1405 = vmatpush1.xpose.msra.mxu0 0.0
  %1406 = vmatprep.subr.mxu0 0.0
  %1407 = vmatpush1.xpose.msra.mxu0 0.0
  %1408 = vmatprep.mubr.f32.mxu0 0.0
  %1409 = vmatmul.mubr.f32.gmra.mrb[0].mxu0 %v1340
  %v1410 = vpop.f32.mrb[0].mxu0
  %v1411 = vadd.f32 0.0, %v1410
  %v1412 = vpop.f32.mrb[0].mxu0
  %1413 = vdwg.mxu0
  %v1414 = vmul.f32 %v1411, 0.35355338
  %v1415 = vadd.f32 %v1414, %v913
  %v1416 = vsel %vm146, %v1415, -inf
  %1417 = vmax.xlane.f32.xlu0 %v1416
  %v1418 = vpop.xlane.xlu0 %1417
  %v1419 = vsub.f32 %v1415, %v1418
  %v1420 = vmul.f32 %v1419, 1.442695
  %v1421 = vpow.pop %v1420
  %v1422 = vsel %vm146, %v1421, 0.0
  %1423 = vadd.xlane.f32.xlu0 %v1422
  %v1424 = vpop.xlane.xlu0 %1423
  %v1425 = vrcp.pop %v1424
  %v1426 = vmul.f32 %v1421, %v1425
  %1427 = vrot.lane.b32.xlu0 %v140, 40
  %v1428 = vpop.permute.xlu0 %1427
  %v1431 = vsel %vm146, %v1426, 0
  %1433 = vmatprep.subr.mxu0 0.0
  %1434 = vmatpush1.msra.mxu0 %v1428
  %1435 = vmatprep.subr.mxu0 0.0
  %1436 = vmatpush1.msra.mxu0 0.0
  %1437 = vmatprep.subr.mxu0 0.0
  %1438 = vmatpush1.msra.mxu0 0.0
  %1439 = vmatprep.subr.mxu0 0.0
  %1440 = vmatpush1.msra.mxu0 0.0
  %1441 = vmatprep.subr.mxu0 0.0
  %1442 = vmatpush1.msra.mxu0 0.0
  %1443 = vmatprep.subr.mxu0 0.0
  %1444 = vmatpush1.msra.mxu0 0.0
  %1445 = vmatprep.subr.mxu0 0.0
  %1446 = vmatpush1.msra.mxu0 0.0
  %1447 = vmatprep.subr.mxu0 0.0
  %1448 = vmatpush1.msra.mxu0 0.0
  %1449 = vmatprep.subr.mxu0 0.0
  %1450 = vmatpush1.msra.mxu0 0.0
  %1451 = vmatprep.subr.mxu0 0.0
  %1452 = vmatpush1.msra.mxu0 0.0
  %1453 = vmatprep.subr.mxu0 0.0
  %1454 = vmatpush1.msra.mxu0 0.0
  %1455 = vmatprep.subr.mxu0 0.0
  %1456 = vmatpush1.msra.mxu0 0.0
  %1457 = vmatprep.subr.mxu0 0.0
  %1458 = vmatpush1.msra.mxu0 0.0
  %1459 = vmatprep.subr.mxu0 0.0
  %1460 = vmatpush1.msra.mxu0 0.0
  %1461 = vmatprep.subr.mxu0 0.0
  %1462 = vmatpush1.msra.mxu0 0.0
  %1463 = vmatprep.subr.mxu0 0.0
  %1464 = vmatpush1.msra.mxu0 0.0
  %1465 = vmatprep.subr.mxu0 0.0
  %1466 = vmatpush1.msra.mxu0 0.0
  %1467 = vmatprep.subr.mxu0 0.0
  %1468 = vmatpush1.msra.mxu0 0.0
  %1469 = vmatprep.subr.mxu0 0.0
  %1470 = vmatpush1.msra.mxu0 0.0
  %1471 = vmatprep.subr.mxu0 0.0
  %1472 = vmatpush1.msra.mxu0 0.0
  %1473 = vmatprep.subr.mxu0 0.0
  %1474 = vmatpush1.msra.mxu0 0.0
  %1475 = vmatprep.subr.mxu0 0.0
  %1476 = vmatpush1.msra.mxu0 0.0
  %1477 = vmatprep.subr.mxu0 0.0
  %1478 = vmatpush1.msra.mxu0 0.0
  %1479 = vmatprep.subr.mxu0 0.0
  %1480 = vmatpush1.msra.mxu0 0.0
  %1481 = vmatprep.subr.mxu0 0.0
  %1482 = vmatpush1.msra.mxu0 0.0
  %1483 = vmatprep.subr.mxu0 0.0
  %1484 = vmatpush1.msra.mxu0 0.0
  %1485 = vmatprep.subr.mxu0 0.0
  %1486 = vmatpush1.msra.mxu0 0.0
  %1487 = vmatprep.subr.mxu0 0.0
  %1488 = vmatpush1.msra.mxu0 0.0
  %1489 = vmatprep.subr.mxu0 0.0
  %1490 = vmatpush1.msra.mxu0 0.0
  %1491 = vmatprep.subr.mxu0 0.0
  %1492 = vmatpush1.msra.mxu0 0.0
  %1493 = vmatprep.subr.mxu0 0.0
  %1494 = vmatpush1.msra.mxu0 0.0
  %1495 = vmatprep.subr.mxu0 0.0
  %1496 = vmatpush1.msra.mxu0 0.0
  %1497 = vmatprep.mubr.f32.mxu0 0.0
  %1498 = vmatmul.mubr.f32.gmra.mrb[0].mxu0 %v1431
  %v1499 = vpop.f32.mrb[0].mxu0
  %v1500 = vadd.f32 0.0, %v1499
  %v1501 = vpop.f32.mrb[0].mxu0
  %1502 = vdwg.mxu0
  %1504 = vrot.lane.b32.xlu0 %v1166, 8
  %v1505 = vpop.permute.xlu0 %1504
  %1508 = vrot.lane.b32.xlu0 %v1333, 16
  %v1509 = vpop.permute.xlu0 %1508
  %1512 = vrot.lane.b32.xlu0 %v1500, 24
  %v1513 = vpop.permute.xlu0 %1512
  %v1515 = vsel %vm146, %v999, %v1505
  %v1516 = vsel %vm828, %v1515, %v1509
  %v1517 = vsel %vm830, %v1516, %v1513
  %v1518 = vld [vmem:[%s4] sm:$0xff]
  %v1519 = vld [vmem:[%s4 + $0x8] sm:$0xff]
  %v1520 = vld [vmem:[%s4 + $0x10] sm:$0xff]
  %v1521 = vld [vmem:[%s4 + $0x18] sm:$0xff]
  %v1522 = vld [vmem:[%s5] sm:$0x1]
  %v1524 = vlaneseq
  %v1525 = vshrl.u32 %v1524, 7
  %v1526 = vsub.s32 0, %v1525
  %v1527 = vrot.slane %v1522, %v1526
  %v1530 = vsel %vm61, %v831, 0
  %v1533 = vsel %vm61, %v1517, 0
  %1535 = vmatprep.subr.mxu0 0.0
  %1536 = vmatpush1.msra.mxu0 %v1518
  %1537 = vmatprep.subr.mxu0 0.0
  %1538 = vmatpush1.msra.mxu0 %v1519
  %1539 = vmatprep.subr.mxu0 0.0
  %1540 = vmatpush1.msra.mxu0 %v1520
  %1541 = vmatprep.subr.mxu0 0.0
  %1542 = vmatpush1.msra.mxu0 %v1521
  %1543 = vmatprep.subr.mxu0 0.0
  %1544 = vmatpush1.msra.mxu0 0.0
  %1545 = vmatprep.subr.mxu0 0.0
  %1546 = vmatpush1.msra.mxu0 0.0
  %1547 = vmatprep.subr.mxu0 0.0
  %1548 = vmatpush1.msra.mxu0 0.0
  %1549 = vmatprep.subr.mxu0 0.0
  %1550 = vmatpush1.msra.mxu0 0.0
  %1551 = vmatprep.subr.mxu0 0.0
  %1552 = vmatpush1.msra.mxu0 0.0
  %1553 = vmatprep.subr.mxu0 0.0
  %1554 = vmatpush1.msra.mxu0 0.0
  %1555 = vmatprep.subr.mxu0 0.0
  %1556 = vmatpush1.msra.mxu0 0.0
  %1557 = vmatprep.subr.mxu0 0.0
  %1558 = vmatpush1.msra.mxu0 0.0
  %1559 = vmatprep.subr.mxu0 0.0
  %1560 = vmatpush1.msra.mxu0 0.0
  %1561 = vmatprep.subr.mxu0 0.0
  %1562 = vmatpush1.msra.mxu0 0.0
  %1563 = vmatprep.subr.mxu0 0.0
  %1564 = vmatpush1.msra.mxu0 0.0
  %1565 = vmatprep.subr.mxu0 0.0
  %1566 = vmatpush1.msra.mxu0 0.0
  %1567 = vmatprep.subr.mxu0 0.0
  %1568 = vmatpush1.msra.mxu0 0.0
  %1569 = vmatprep.subr.mxu0 0.0
  %1570 = vmatpush1.msra.mxu0 0.0
  %1571 = vmatprep.subr.mxu0 0.0
  %1572 = vmatpush1.msra.mxu0 0.0
  %1573 = vmatprep.subr.mxu0 0.0
  %1574 = vmatpush1.msra.mxu0 0.0
  %1575 = vmatprep.subr.mxu0 0.0
  %1576 = vmatpush1.msra.mxu0 0.0
  %1577 = vmatprep.subr.mxu0 0.0
  %1578 = vmatpush1.msra.mxu0 0.0
  %1579 = vmatprep.subr.mxu0 0.0
  %1580 = vmatpush1.msra.mxu0 0.0
  %1581 = vmatprep.subr.mxu0 0.0
  %1582 = vmatpush1.msra.mxu0 0.0
  %1583 = vmatprep.subr.mxu0 0.0
  %1584 = vmatpush1.msra.mxu0 0.0
  %1585 = vmatprep.subr.mxu0 0.0
  %1586 = vmatpush1.msra.mxu0 0.0
  %1587 = vmatprep.subr.mxu0 0.0
  %1588 = vmatpush1.msra.mxu0 0.0
  %1589 = vmatprep.subr.mxu0 0.0
  %1590 = vmatpush1.msra.mxu0 0.0
  %1591 = vmatprep.subr.mxu0 0.0
  %1592 = vmatpush1.msra.mxu0 0.0
  %1593 = vmatprep.subr.mxu0 0.0
  %1594 = vmatpush1.msra.mxu0 0.0
  %1595 = vmatprep.subr.mxu0 0.0
  %1596 = vmatpush1.msra.mxu0 0.0
  %1597 = vmatprep.subr.mxu0 0.0
  %1598 = vmatpush1.msra.mxu0 0.0
  %1599 = vmatprep.mubr.f32.mxu0 0.0
  %1600 = vmatmul.mubr.f32.gmra.mrb[0].mxu0 %v1530
  %v1601 = vpop.f32.mrb[0].mxu0
  %v1602 = vadd.f32 %v1527, %v1601
  %v1603 = vpop.f32.mrb[0].mxu0
  %1604 = vmatprep.mubr.f32.mxu0 0.0
  %1605 = vmatmul.mubr.f32.gmra.mrb[0].mxu0 %v1533
  %v1606 = vpop.f32.mrb[0].mxu0
  %v1607 = vadd.f32 %v1527, %v1606
  %v1608 = vpop.f32.mrb[0].mxu0
  %1609 = vdwg.mxu0
  %v1610 = vadd.f32 %v1602, %v47
  %v1611 = vadd.f32 %v1607, %v48
  %v1612 = vld [vmem:[%s6] sm:$0x1]
  %v1613 = vld [vmem:[%s7] sm:$0x1]
  %v1614 = vsel %vm61, %v1610, 0.0
  %1615 = vadd.xlane.f32.xlu0 %v1614
  %v1616 = vpop.xlane.xlu0 %1615
  %v1617 = vsel %vm61, %v1611, 0.0
  %1618 = vadd.xlane.f32.xlu0 %v1617
  %v1619 = vpop.xlane.xlu0 %1618
  %v1620 = vrcp.pop 32.0
  %v1621 = vmul.f32 %v1616, %v1620
  %v1622 = vmul.f32 %v1619, %v1620
  %v1623 = vsub.f32 %v1610, %v1621
  %v1624 = vsub.f32 %v1611, %v1622
  %v1625 = vmul.f32 %v1623, %v1623
  %v1626 = vmul.f32 %v1624, %v1624
  %v1627 = vsel %vm61, %v1625, 0.0
  %1628 = vadd.xlane.f32.xlu0 %v1627
  %v1629 = vpop.xlane.xlu0 %1628
  %v1630 = vsel %vm61, %v1626, 0.0
  %1631 = vadd.xlane.f32.xlu0 %v1630
  %v1632 = vpop.xlane.xlu0 %1631
  %v1633 = vmul.f32 %v1629, %v1620
  %v1634 = vmul.f32 %v1632, %v1620
  %v1635 = vadd.f32 %v1633, 1e-12
  %v1636 = vadd.f32 %v1634, 1e-12
  %v1637 = vrsqrt.pop %v1635
  %v1638 = vrsqrt.pop %v1636
  %v1639 = vmul.f32 %v1623, %v1637
  %v1640 = vmul.f32 %v1624, %v1638
  %v1642 = vlaneseq
  %v1643 = vshrl.u32 %v1642, 7
  %v1644 = vsub.s32 0, %v1643
  %v1645 = vrot.slane %v1612, %v1644
  %v1647 = vmul.f32 %v1639, %v1645
  %v1648 = vmul.f32 %v1640, %v1645
  %v1650 = vlaneseq
  %v1651 = vshrl.u32 %v1650, 7
  %v1652 = vsub.s32 0, %v1651
  %v1653 = vrot.slane %v1613, %v1652
  %v1655 = vadd.f32 %v1647, %v1653
  %v1656 = vadd.f32 %v1648, %v1653
  %v1657 = vld [vmem:[%s8] sm:$0xff]
  %v1658 = vld [vmem:[%s8 + $0x8] sm:$0xff]
  %v1659 = vld [vmem:[%s8 + $0x10] sm:$0xff]
  %v1660 = vld [vmem:[%s8 + $0x18] sm:$0xff]
  %v1661 = vld [vmem:[%s9] sm:$0x1]
  %v1663 = vlaneseq
  %v1664 = vshrl.u32 %v1663, 7
  %v1665 = vsub.s32 0, %v1664
  %v1666 = vrot.slane %v1661, %v1665
  %v1669 = vsel %vm61, %v1655, 0
  %v1672 = vsel %vm61, %v1656, 0
  %1674 = vmatprep.subr.mxu0 0.0
  %1675 = vmatpush1.msra.mxu0 %v1657
  %1676 = vmatprep.subr.mxu0 0.0
  %1677 = vmatpush1.msra.mxu0 %v1658
  %1678 = vmatprep.subr.mxu0 0.0
  %1679 = vmatpush1.msra.mxu0 %v1659
  %1680 = vmatprep.subr.mxu0 0.0
  %1681 = vmatpush1.msra.mxu0 %v1660
  %1682 = vmatprep.subr.mxu0 0.0
  %1683 = vmatpush1.msra.mxu0 0.0
  %1684 = vmatprep.subr.mxu0 0.0
  %1685 = vmatpush1.msra.mxu0 0.0
  %1686 = vmatprep.subr.mxu0 0.0
  %1687 = vmatpush1.msra.mxu0 0.0
  %1688 = vmatprep.subr.mxu0 0.0
  %1689 = vmatpush1.msra.mxu0 0.0
  %1690 = vmatprep.subr.mxu0 0.0
  %1691 = vmatpush1.msra.mxu0 0.0
  %1692 = vmatprep.subr.mxu0 0.0
  %1693 = vmatpush1.msra.mxu0 0.0
  %1694 = vmatprep.subr.mxu0 0.0
  %1695 = vmatpush1.msra.mxu0 0.0
  %1696 = vmatprep.subr.mxu0 0.0
  %1697 = vmatpush1.msra.mxu0 0.0
  %1698 = vmatprep.subr.mxu0 0.0
  %1699 = vmatpush1.msra.mxu0 0.0
  %1700 = vmatprep.subr.mxu0 0.0
  %1701 = vmatpush1.msra.mxu0 0.0
  %1702 = vmatprep.subr.mxu0 0.0
  %1703 = vmatpush1.msra.mxu0 0.0
  %1704 = vmatprep.subr.mxu0 0.0
  %1705 = vmatpush1.msra.mxu0 0.0
  %1706 = vmatprep.subr.mxu0 0.0
  %1707 = vmatpush1.msra.mxu0 0.0
  %1708 = vmatprep.subr.mxu0 0.0
  %1709 = vmatpush1.msra.mxu0 0.0
  %1710 = vmatprep.subr.mxu0 0.0
  %1711 = vmatpush1.msra.mxu0 0.0
  %1712 = vmatprep.subr.mxu0 0.0
  %1713 = vmatpush1.msra.mxu0 0.0
  %1714 = vmatprep.subr.mxu0 0.0
  %1715 = vmatpush1.msra.mxu0 0.0
  %1716 = vmatprep.subr.mxu0 0.0
  %1717 = vmatpush1.msra.mxu0 0.0
  %1718 = vmatprep.subr.mxu0 0.0
  %1719 = vmatpush1.msra.mxu0 0.0
  %1720 = vmatprep.subr.mxu0 0.0
  %1721 = vmatpush1.msra.mxu0 0.0
  %1722 = vmatprep.subr.mxu0 0.0
  %1723 = vmatpush1.msra.mxu0 0.0
  %1724 = vmatprep.subr.mxu0 0.0
  %1725 = vmatpush1.msra.mxu0 0.0
  %1726 = vmatprep.subr.mxu0 0.0
  %1727 = vmatpush1.msra.mxu0 0.0
  %1728 = vmatprep.subr.mxu0 0.0
  %1729 = vmatpush1.msra.mxu0 0.0
  %1730 = vmatprep.subr.mxu0 0.0
  %1731 = vmatpush1.msra.mxu0 0.0
  %1732 = vmatprep.subr.mxu0 0.0
  %1733 = vmatpush1.msra.mxu0 0.0
  %1734 = vmatprep.subr.mxu0 0.0
  %1735 = vmatpush1.msra.mxu0 0.0
  %1736 = vmatprep.subr.mxu0 0.0
  %1737 = vmatpush1.msra.mxu0 0.0
  %1738 = vmatprep.mubr.f32.mxu0 0.0
  %1739 = vmatmul.mubr.f32.gmra.mrb[0].mxu0 %v1669
  %v1740 = vpop.f32.mrb[0].mxu0
  %v1741 = vadd.f32 %v1666, %v1740
  %v1742 = vpop.f32.mrb[0].mxu0
  %1743 = vmatprep.mubr.f32.mxu0 0.0
  %1744 = vmatmul.mubr.f32.gmra.mrb[0].mxu0 %v1672
  %v1745 = vpop.f32.mrb[0].mxu0
  %v1746 = vadd.f32 %v1666, %v1745
  %v1747 = vpop.f32.mrb[0].mxu0
  %1748 = vdwg.mxu0
  %v1749 = vmul.f32 %v1741, 0.5
  %v1750 = vmul.f32 %v1746, 0.5
  %v1751 = vmul.f32 %v1741, 0.70710677
  %v1752 = vmul.f32 %v1746, 0.70710677
  %v1753 = vand.u32 2147483647, %v1751
  %v1754 = vand.u32 2147483647, %v1752
  %v1755 = vmul.f32 %v1753, 0.3275911
  %v1756 = vmul.f32 %v1754, 0.3275911
  %v1757 = vadd.f32 %v1755, 1.0
  %v1758 = vadd.f32 %v1756, 1.0
  %v1759 = vrcp.pop %v1757
  %v1760 = vmul.f32 1.0, %v1759
  %v1761 = vrcp.pop %v1758
  %v1762 = vmul.f32 1.0, %v1761
  %v1763 = vmul.f32 %v1760, 1.0614054
  %v1764 = vmul.f32 %v1762, 1.0614054
  %v1765 = vsub.f32 %v1763, 1.4531521
  %v1766 = vsub.f32 %v1764, 1.4531521
  %v1767 = vmul.f32 %v1765, %v1760
  %v1768 = vmul.f32 %v1766, %v1762
  %v1769 = vadd.f32 %v1767, 1.4214138
  %v1770 = vadd.f32 %v1768, 1.4214138
  %v1771 = vmul.f32 %v1769, %v1760
  %v1772 = vmul.f32 %v1770, %v1762
  %v1773 = vsub.f32 %v1771, 0.28449672
  %v1774 = vsub.f32 %v1772, 0.28449672
  %v1775 = vmul.f32 %v1773, %v1760
  %v1776 = vmul.f32 %v1774, %v1762
  %v1777 = vadd.f32 %v1775, 0.2548296
  %v1778 = vadd.f32 %v1776, 0.2548296
  %v1779 = vmul.f32 %v1777, %v1760
  %v1780 = vmul.f32 %v1778, %v1762
  %v1781 = vmul.f32 %v1751, %v1751
  %v1782 = vmul.f32 %v1752, %v1752
  %v1783 = vsub.f32 0.0, %v1781
  %v1784 = vsub.f32 0.0, %v1782
  %v1785 = vmul.f32 %v1783, 1.442695
  %v1786 = vpow.pop %v1785
  %v1787 = vmul.f32 %v1784, 1.442695
  %v1788 = vpow.pop %v1787
  %v1789 = vmul.f32 %v1779, %v1786
  %v1790 = vmul.f32 %v1780, %v1788
  %v1791 = vsub.f32 1.0, %v1789
  %v1792 = vsub.f32 1.0, %v1790
  %vm1793 = vcmp.ge.f32.partialorder %v1751, 0.0
  %vm1794 = vcmp.ge.f32.partialorder %v1752, 0.0
  %v1795 = vsub.f32 0.0, %v1791
  %v1796 = vsub.f32 0.0, %v1792
  %v1797 = vsel %vm1793, %v1791, %v1795
  %v1798 = vsel %vm1794, %v1792, %v1796
  %v1799 = vadd.f32 %v1797, 1.0
  %v1800 = vadd.f32 %v1798, 1.0
  %v1801 = vmul.f32 %v1749, %v1799
  %v1802 = vmul.f32 %v1750, %v1800
  %v1803 = vld [vmem:[%s10] sm:$0xff]
  %v1804 = vld [vmem:[%s10 + $0x8] sm:$0xff]
  %v1805 = vld [vmem:[%s10 + $0x10] sm:$0xff]
  %v1806 = vld [vmem:[%s10 + $0x18] sm:$0xff]
  %v1807 = vld [vmem:[%s10 + $0x20] sm:$0xff]
  %v1808 = vld [vmem:[%s10 + $0x28] sm:$0xff]
  %v1809 = vld [vmem:[%s10 + $0x30] sm:$0xff]
  %v1810 = vld [vmem:[%s10 + $0x38] sm:$0xff]
  %v1811 = vld [vmem:[%s10 + $0x40] sm:$0xff]
  %v1812 = vld [vmem:[%s10 + $0x48] sm:$0xff]
  %v1813 = vld [vmem:[%s10 + $0x50] sm:$0xff]
  %v1814 = vld [vmem:[%s10 + $0x58] sm:$0xff]
  %v1815 = vld [vmem:[%s10 + $0x60] sm:$0xff]
  %v1816 = vld [vmem:[%s10 + $0x68] sm:$0xff]
  %v1817 = vld [vmem:[%s10 + $0x70] sm:$0xff]
  %v1818 = vld [vmem:[%s10 + $0x78] sm:$0xff]
  %v1819 = vld [vmem:[%s11] sm:$0x1]
  %v1821 = vlaneseq
  %v1822 = vshrl.u32 %v1821, 7
  %v1823 = vsub.s32 0, %v1822
  %v1824 = vrot.slane %v1819, %v1823
  %1826 = vmatprep.subr.mxu0 0.0
  %1827 = vmatpush1.msra.mxu0 %v1803
  %1828 = vmatprep.subr.mxu0 0.0
  %1829 = vmatpush1.msra.mxu0 %v1804
  %1830 = vmatprep.subr.mxu0 0.0
  %1831 = vmatpush1.msra.mxu0 %v1805
  %1832 = vmatprep.subr.mxu0 0.0
  %1833 = vmatpush1.msra.mxu0 %v1806
  %1834 = vmatprep.subr.mxu0 0.0
  %1835 = vmatpush1.msra.mxu0 %v1807
  %1836 = vmatprep.subr.mxu0 0.0
  %1837 = vmatpush1.msra.mxu0 %v1808
  %1838 = vmatprep.subr.mxu0 0.0
  %1839 = vmatpush1.msra.mxu0 %v1809
  %1840 = vmatprep.subr.mxu0 0.0
  %1841 = vmatpush1.msra.mxu0 %v1810
  %1842 = vmatprep.subr.mxu0 0.0
  %1843 = vmatpush1.msra.mxu0 %v1811
  %1844 = vmatprep.subr.mxu0 0.0
  %1845 = vmatpush1.msra.mxu0 %v1812
  %1846 = vmatprep.subr.mxu0 0.0
  %1847 = vmatpush1.msra.mxu0 %v1813
  %1848 = vmatprep.subr.mxu0 0.0
  %1849 = vmatpush1.msra.mxu0 %v1814
  %1850 = vmatprep.subr.mxu0 0.0
  %1851 = vmatpush1.msra.mxu0 %v1815
  %1852 = vmatprep.subr.mxu0 0.0
  %1853 = vmatpush1.msra.mxu0 %v1816
  %1854 = vmatprep.subr.mxu0 0.0
  %1855 = vmatpush1.msra.mxu0 %v1817
  %1856 = vmatprep.subr.mxu0 0.0
  %1857 = vmatpush1.msra.mxu0 %v1818
  %1858 = vmatprep.subr.mxu0 0.0
  %1859 = vmatpush1.msra.mxu0 0.0
  %1860 = vmatprep.subr.mxu0 0.0
  %1861 = vmatpush1.msra.mxu0 0.0
  %1862 = vmatprep.subr.mxu0 0.0
  %1863 = vmatpush1.msra.mxu0 0.0
  %1864 = vmatprep.subr.mxu0 0.0
  %1865 = vmatpush1.msra.mxu0 0.0
  %1866 = vmatprep.subr.mxu0 0.0
  %1867 = vmatpush1.msra.mxu0 0.0
  %1868 = vmatprep.subr.mxu0 0.0
  %1869 = vmatpush1.msra.mxu0 0.0
  %1870 = vmatprep.subr.mxu0 0.0
  %1871 = vmatpush1.msra.mxu0 0.0
  %1872 = vmatprep.subr.mxu0 0.0
  %1873 = vmatpush1.msra.mxu0 0.0
  %1874 = vmatprep.subr.mxu0 0.0
  %1875 = vmatpush1.msra.mxu0 0.0
  %1876 = vmatprep.subr.mxu0 0.0
  %1877 = vmatpush1.msra.mxu0 0.0
  %1878 = vmatprep.subr.mxu0 0.0
  %1879 = vmatpush1.msra.mxu0 0.0
  %1880 = vmatprep.subr.mxu0 0.0
  %1881 = vmatpush1.msra.mxu0 0.0
  %1882 = vmatprep.subr.mxu0 0.0
  %1883 = vmatpush1.msra.mxu0 0.0
  %1884 = vmatprep.subr.mxu0 0.0
  %1885 = vmatpush1.msra.mxu0 0.0
  %1886 = vmatprep.subr.mxu0 0.0
  %1887 = vmatpush1.msra.mxu0 0.0
  %1888 = vmatprep.subr.mxu0 0.0
  %1889 = vmatpush1.msra.mxu0 0.0
  %1890 = vmatprep.mubr.f32.mxu0 0.0
  %1891 = vmatmul.mubr.f32.gmra.mrb[0].mxu0 %v1801
  %v1892 = vpop.f32.mrb[0].mxu0
  %v1893 = vadd.f32 %v1824, %v1892
  %v1894 = vpop.f32.mrb[0].mxu0
  %1895 = vmatprep.mubr.f32.mxu0 0.0
  %1896 = vmatmul.mubr.f32.gmra.mrb[0].mxu0 %v1802
  %v1897 = vpop.f32.mrb[0].mxu0
  %v1898 = vadd.f32 %v1824, %v1897
  %v1899 = vpop.f32.mrb[0].mxu0
  %1900 = vdwg.mxu0
  %v1901 = vadd.f32 %v1893, %v1655
  %v1902 = vadd.f32 %v1898, %v1656
  %v1903 = vld [vmem:[%s12] sm:$0x1]
  %v1904 = vld [vmem:[%s13] sm:$0x1]
  %v1905 = vsel %vm61, %v1901, 0.0
  %1906 = vadd.xlane.f32.xlu0 %v1905
  %v1907 = vpop.xlane.xlu0 %1906
  %v1908 = vsel %vm61, %v1902, 0.0
  %1909 = vadd.xlane.f32.xlu0 %v1908
  %v1910 = vpop.xlane.xlu0 %1909
  %v1911 = vmul.f32 %v1907, %v1620
  %v1912 = vmul.f32 %v1910, %v1620
  %v1913 = vsub.f32 %v1901, %v1911
  %v1914 = vsub.f32 %v1902, %v1912
  %v1915 = vmul.f32 %v1913, %v1913
  %v1916 = vmul.f32 %v1914, %v1914
  %v1917 = vsel %vm61, %v1915, 0.0
  %1918 = vadd.xlane.f32.xlu0 %v1917
  %v1919 = vpop.xlane.xlu0 %1918
  %v1920 = vsel %vm61, %v1916, 0.0
  %1921 = vadd.xlane.f32.xlu0 %v1920
  %v1922 = vpop.xlane.xlu0 %1921
  %v1923 = vmul.f32 %v1919, %v1620
  %v1924 = vmul.f32 %v1922, %v1620
  %v1925 = vadd.f32 %v1923, 1e-12
  %v1926 = vadd.f32 %v1924, 1e-12
  %v1927 = vrsqrt.pop %v1925
  %v1928 = vrsqrt.pop %v1926
  %v1929 = vmul.f32 %v1913, %v1927
  %v1930 = vmul.f32 %v1914, %v1928
  %v1932 = vlaneseq
  %v1933 = vshrl.u32 %v1932, 7
  %v1934 = vsub.s32 0, %v1933
  %v1935 = vrot.slane %v1903, %v1934
  %v1937 = vmul.f32 %v1929, %v1935
  %v1938 = vmul.f32 %v1930, %v1935
  %v1940 = vlaneseq
  %v1941 = vshrl.u32 %v1940, 7
  %v1942 = vsub.s32 0, %v1941
  %v1943 = vrot.slane %v1904, %v1942
  %v1945 = vadd.f32 %v1937, %v1943
  %v1946 = vadd.f32 %v1938, %v1943
  %1947 = vst.msk [vmem:[%s14] sm:$0xff] %vm61, %v1945
  %1948 = vst.msk [vmem:[%s14 + $0x8] sm:$0xff] %vm61, %v1946
  // Predicated region
  $region58: #{twitter_bert_forward.5} parent=0 // pred_check
    _
  $region59: #{twitter_bert_forward.5} parent=0 // pred_check_branch
    %1950 = sbr.rel (0) target = $region61
  $region60: #{twitter_bert_forward.5} parent=0 // pred_region
    _
  $region61: #{twitter_bert_forward.5} parent=0 // pred_fallthru
    _
  // Predicated region
  $region62: #{twitter_bert_forward.5} parent=0 // pred_check
    _
  $region63: #{twitter_bert_forward.5} parent=0 // pred_check_branch
    %1952 = sbr.rel (0) target = $region65
  $region64: #{twitter_bert_forward.5} parent=0 // pred_region
    _
  $region65: #{twitter_bert_forward.5} parent=0 // pred_fallthru
    _

</llo_original>
